<compile_context>
chip_gen: v7x
topology: tpu7x:2x2x1
jax: 0.10.0
libtpu: 0.0.40
codegen_flags: <defaults>
</compile_context>

<pallas_src>
import functools

import jax
import jax.numpy as jnp
import numpy as np
from jax.experimental import pallas as pl
from jax.experimental.pallas import tpu as pltpu


def _round_up(x, m):
    return (x + m - 1) // m * m


def _pad_gate_cols(w, H, H_pad):
    """Pad a packed-gate (..., 3H) array to (..., 3*H_pad), padding each gate block."""
    if H_pad == H:
        return w
    parts = jnp.split(w, 3, axis=-1)
    pad = [(0, 0)] * (w.ndim - 1) + [(0, H_pad - H)]
    return jnp.concatenate([jnp.pad(p, pad) for p in parts], axis=-1)


# ----------------------------------------------------------------------------
# Fused GRU kernel: per chunk, (1) one big MXU dot for the input path of ALL
# t_chunk steps, (2) sequential recurrence over the chunk.
#
# PyTorch gate order (r, z, n):
#   r = sigmoid(GI_r + h W_hr)                 (b_ir + b_hr folded into GI_r)
#   z = sigmoid(GI_z + h W_hz)                 (b_iz + b_hz folded into GI_z)
#   n = tanh  (GI_n + r * (h W_hn + b_hn))     (b_in folded into GI_n)
#   h = n + z * (h - n)                        (== (1-z)*n + z*h)
# ----------------------------------------------------------------------------
def _gru_fused_kernel(s_total, s_pad, t_chunk, b_pad,
                      x_ref, wih_ref, whh_ref, gib_ref, bhn_ref,
                      out_ref, hn_ref,
                      gi_scratch, h_scratch):
    c = pl.program_id(0)
    last = pl.num_programs(0) - 1
    h_pad = hn_ref.shape[-1]

    @pl.when(c == 0)
    def _():
        h_scratch[...] = jnp.zeros_like(h_scratch)

    # Fused input-path projection for the whole chunk: one large MXU matmul.
    # (The recurrence's per-step matmul uses <5% of the MXU, so this is free filler.)
    gi_scratch[...] = (
        jnp.dot(x_ref[...], wih_ref[...], preferred_element_type=jnp.float32)
        + gib_ref[...].astype(jnp.float32))

    # Hoisted hidden-path bias broadcast (not re-done per step).
    b_hn = bhn_ref[...].astype(jnp.float32)                    # (1, H_pad)

    def make_step(masked):
        def step(i, h):
            row0 = pl.multiple_of(i * b_pad, b_pad)            # sublane-aligned slice
            gi = gi_scratch[pl.ds(row0, b_pad), :]              # (B_pad, 3H_pad) f32
            # Single packed MXU matmul for the hidden path. The carried h stays f32;
            # only the matmul operand is cast to the (possibly bf16) weight dtype.
            gh = jnp.dot(h.astype(whh_ref.dtype), whh_ref[...],
                         preferred_element_type=jnp.float32)    # (B_pad, 3H_pad)
            r = jax.nn.sigmoid(gi[:, :h_pad] + gh[:, :h_pad])
            z = jax.nn.sigmoid(gi[:, h_pad:2 * h_pad] + gh[:, h_pad:2 * h_pad])
            n = jnp.tanh(gi[:, 2 * h_pad:] + r * (gh[:, 2 * h_pad:] + b_hn))
            h_new = n + z * (h - n)                             # one fewer VPU op
            if masked:
                # Keep the carried hidden state exact across padded time steps.
                h_new = jnp.where(c * t_chunk + i < s_total, h_new, h)
            out_ref[i] = h_new.astype(out_ref.dtype)            # lane-dense store
            return h_new
        return step

    def run(masked):
        h_scratch[...] = jax.lax.fori_loop(0, t_chunk, make_step(masked),
                                           h_scratch[...], unroll=True)

    if s_pad == s_total:
        run(False)                                              # no padded steps anywhere
    else:
        @pl.when(c != last)
        def _():
            run(False)                                          # unmasked fast path

        @pl.when(c == last)
        def _():
            run(True)                                           # only last chunk is padded

    # Only the last grid step writes the final hidden state.
    @pl.when(c == last)
    def _():
        hn_ref[...] = h_scratch[...].astype(hn_ref.dtype)


def gru_encoder_pallas(x2d, w_ih_p, w_hh_p, gi_bias_p, b_hn_p,
                       S, S_pad, B_pad, t_chunk, matmul_dtype):
    """x2d: (S_pad*B_pad, E) time-major rows. Returns ((S_pad,B_pad,H_pad), (B_pad,H_pad))."""
    E = x2d.shape[-1]
    H_pad = b_hn_p.shape[-1]
    n_chunks = S_pad // t_chunk
    N3 = 3 * H_pad

    # VMEM budget (double-buffered chunk I/O + resident weights + scratch), v7x-aware.
    isz = jnp.dtype(matmul_dtype).itemsize
    est = (2 * t_chunk * B_pad * E * isz          # X chunk (double-buffered)
           + 2 * E * N3 * isz                     # W_ih (resident)
           + 2 * H_pad * N3 * isz                 # W_hh (resident)
           + 2 * t_chunk * B_pad * H_pad * 4      # out chunk
           + t_chunk * B_pad * N3 * 4             # GI scratch
           + 4 * B_pad * H_pad * 4)               # hn + hidden carry (approx)
    vmem_limit = int(min(max(2 * est + (4 << 20), 32 << 20), 64 << 20))

    out, hn = pl.pallas_call(
        functools.partial(_gru_fused_kernel, S, S_pad, t_chunk, B_pad),
        out_shape=(
            jax.ShapeDtypeStruct((S_pad, B_pad, H_pad), jnp.float32),   # all hidden states
            jax.ShapeDtypeStruct((B_pad, H_pad), jnp.float32),          # final hidden
        ),
        grid_spec=pltpu.PrefetchScalarGridSpec(
            num_scalar_prefetch=0,
            grid=(n_chunks,),
            in_specs=[
                pl.BlockSpec((t_chunk * B_pad, E), lambda c: (c, 0)),   # X chunk
                pl.BlockSpec((E, N3), lambda c: (0, 0)),                # packed W_ih (resident)
                pl.BlockSpec((H_pad, N3), lambda c: (0, 0)),            # packed W_hh (resident)
                pl.BlockSpec((1, N3), lambda c: (0, 0)),                # folded input-path bias
                pl.BlockSpec((1, H_pad), lambda c: (0, 0)),             # b_hn
            ],
            out_specs=[
                pl.BlockSpec((t_chunk, B_pad, H_pad), lambda c: (c, 0, 0)),
                pl.BlockSpec((B_pad, H_pad), lambda c: (0, 0)),
            ],
            scratch_shapes=[
                pltpu.VMEM((t_chunk * B_pad, N3), jnp.float32),         # GI for the chunk
                pltpu.VMEM((B_pad, H_pad), jnp.float32),                # hidden carry
            ],
        ),
        compiler_params=pltpu.CompilerParams(
            dimension_semantics=("arbitrary",),     # recurrence -> strictly sequential
            vmem_limit_bytes=vmem_limit,
        ),
    )(x2d.astype(matmul_dtype), w_ih_p.astype(matmul_dtype),
      w_hh_p.astype(matmul_dtype), gi_bias_p, b_hn_p)
    return out, hn


# ----------------------------------------------------------------------------
# Encoder parameters (packed gate layout: columns are [r | z | n], like torch.nn.GRU)
# ----------------------------------------------------------------------------
def init_encoder_params(key, en_vocab_size, encoder_embedding_num, encoder_hidden_num):
    E, H = encoder_embedding_num, encoder_hidden_num
    k_emb, k_wih, k_whh, k_bih, k_bhh = jax.random.split(key, 5)
    bound = 1.0 / np.sqrt(H)
    return {
        # nn.Embedding default init: N(0, 1)
        "embedding": jax.random.normal(k_emb, (en_vocab_size, E), jnp.float32),
        # nn.GRU default init: U(-1/sqrt(H), 1/sqrt(H)); packed gate order (r, z, n)
        "w_ih": jax.random.uniform(k_wih, (E, 3 * H), jnp.float32, -bound, bound),
        "w_hh": jax.random.uniform(k_whh, (H, 3 * H), jnp.float32, -bound, bound),
        "b_ih": jax.random.uniform(k_bih, (3 * H,), jnp.float32, -bound, bound),
        "b_hh": jax.random.uniform(k_bhh, (3 * H,), jnp.float32, -bound, bound),
    }


def encoder_forward(params, en_index, matmul_dtype=jnp.bfloat16, t_chunk=32):
    """en_index: (B, S) int32 -> (encoder_output (B,S,H), encoder_hidden (1,B,H))."""
    B, S = en_index.shape
    E = params["embedding"].shape[1]
    H = params["w_hh"].shape[0]
    H_pad = _round_up(H, 128)          # lane-dense hidden
    B_pad = _round_up(B, 8)            # sublane-dense batch
    t_chunk = min(t_chunk, S)          # short sequences: no time padding at all
    S_pad = _round_up(S, t_chunk)

    # 1) Embedding lookup, gathered directly in TIME-MAJOR order (no transpose pass).
    x = jnp.take(params["embedding"], en_index.T, axis=0)                 # (S, B, E)
    if S_pad != S or B_pad != B:
        x = jnp.pad(x, ((0, S_pad - S), (0, B_pad - B), (0, 0)))
    x2d = x.reshape(S_pad * B_pad, E)

    # 2) Packed / padded weights & biases. Fold b_ih + [b_hr, b_hz, 0] into the input
    #    path; keep b_hn separate because r multiplies it. Padded gate columns are zero,
    #    so padded hidden lanes provably stay zero through the recurrence.
    w_ih_p = _pad_gate_cols(params["w_ih"], H, H_pad)                     # (E, 3H_pad)
    w_hh_p = jnp.pad(_pad_gate_cols(params["w_hh"], H, H_pad),
                     ((0, H_pad - H), (0, 0)))                            # (H_pad, 3H_pad)
    b_hh = params["b_hh"]
    gi_bias = params["b_ih"] + jnp.concatenate(
        [b_hh[:H], b_hh[H:2 * H], jnp.zeros((H,), jnp.float32)])
    gi_bias_p = _pad_gate_cols(gi_bias[None, :], H, H_pad)                # (1, 3H_pad)
    b_hn_p = jnp.pad(b_hh[2 * H:], (0, H_pad - H))[None, :]               # (1, H_pad)

    # 3) Single fused kernel: per-chunk input projection + sequential recurrence.
    out, hn = gru_encoder_pallas(x2d, w_ih_p, w_hh_p, gi_bias_p, b_hn_p,
                                 S, S_pad, B_pad, t_chunk, matmul_dtype)

    encoder_output = jnp.transpose(out[:S, :B, :H], (1, 0, 2))            # (B, S, H)
    encoder_hidden = hn[None, :B, :H]                                     # (1, B, H)
    return encoder_output, encoder_hidden


# ----------------------------------------------------------------------------
# Pure-JAX reference GRU (for correctness check)
# ----------------------------------------------------------------------------
def encoder_forward_ref(params, en_index):
    emb = jnp.take(params["embedding"], en_index, axis=0)                 # (B, S, E)
    x_sbe = jnp.transpose(emb, (1, 0, 2))
    B = en_index.shape[0]
    H = params["w_hh"].shape[0]
    w_ih, w_hh = params["w_ih"], params["w_hh"]
    b_ih, b_hh = params["b_ih"], params["b_hh"]

    def step(h, x):
        gi = x @ w_ih + b_ih
        gh = h @ w_hh + b_hh
        r = jax.nn.sigmoid(gi[:, :H] + gh[:, :H])
        z = jax.nn.sigmoid(gi[:, H:2 * H] + gh[:, H:2 * H])
        n = jnp.tanh(gi[:, 2 * H:] + r * gh[:, 2 * H:])
        h_new = (1.0 - z) * n + z * h
        return h_new, h_new

    h0 = jnp.zeros((B, H), jnp.float32)
    hN, outs = jax.lax.scan(step, h0, x_sbe)
    return jnp.transpose(outs, (1, 0, 2)), hN[None]


if __name__ == "__main__":
    en_vocab_size = 50
    encoder_embedding_num = 32
    encoder_hidden_num = 32
    batch, seq = 4, 8

    key = jax.random.PRNGKey(0)
    k_params, k_idx, k_idx2 = jax.random.split(key, 3)
    params = init_encoder_params(k_params, en_vocab_size,
                                 encoder_embedding_num, encoder_hidden_num)
    en_index = jax.random.randint(k_idx, (batch, seq), 0, en_vocab_size, dtype=jnp.int32)

    ref_out, ref_hid = encoder_forward_ref(params, en_index)

    # f32 MXU operands: tight check against the pure-JAX reference.
    enc_out, enc_hid = encoder_forward(params, en_index, matmul_dtype=jnp.float32)
    enc_out = jax.block_until_ready(enc_out)
    enc_hid = jax.block_until_ready(enc_hid)
    np.testing.assert_allclose(np.asarray(enc_out), np.asarray(ref_out), rtol=1e-5, atol=1e-5)
    np.testing.assert_allclose(np.asarray(enc_hid), np.asarray(ref_hid), rtol=1e-5, atol=1e-5)

    # Default fast path: bf16 MXU operands (all chip generations); elementwise math and the
    # carried hidden state stay f32. Looser tolerance (bf16 rounding of the per-step gh term).
    enc_out_bf, enc_hid_bf = encoder_forward(params, en_index)
    enc_out_bf = jax.block_until_ready(enc_out_bf)
    enc_hid_bf = jax.block_until_ready(enc_hid_bf)
    np.testing.assert_allclose(np.asarray(enc_out_bf), np.asarray(ref_out), rtol=5e-2, atol=5e-2)
    np.testing.assert_allclose(np.asarray(enc_hid_bf), np.asarray(ref_hid), rtol=5e-2, atol=5e-2)

    # Multi-chunk + masked-last-chunk path (S not a multiple of t_chunk), f32 tight check.
    seq2, t_chunk2 = 20, 8
    en_index2 = jax.random.randint(k_idx2, (batch, seq2), 0, en_vocab_size, dtype=jnp.int32)
    ref_out2, ref_hid2 = encoder_forward_ref(params, en_index2)
    enc_out2, enc_hid2 = encoder_forward(params, en_index2,
                                         matmul_dtype=jnp.float32, t_chunk=t_chunk2)
    enc_out2 = jax.block_until_ready(enc_out2)
    enc_hid2 = jax.block_until_ready(enc_hid2)
    np.testing.assert_allclose(np.asarray(enc_out2), np.asarray(ref_out2), rtol=1e-5, atol=1e-5)
    np.testing.assert_allclose(np.asarray(enc_hid2), np.asarray(ref_hid2), rtol=1e-5, atol=1e-5)

    assert enc_out.shape == (batch, seq, encoder_hidden_num)
    assert enc_hid.shape == (1, batch, encoder_hidden_num)
    print("KERNEL_OK")
</pallas_src>

<mosaic_0001>
module attributes {stable_mosaic.version = 11 : i64} {
  func.func @_gru_fused_kernel(%arg0: i32, %arg1: memref<64x32xf32, #tpu.memory_space<vmem>>, %arg2: memref<32x384xf32, #tpu.memory_space<vmem>>, %arg3: memref<128x384xf32, #tpu.memory_space<vmem>>, %arg4: memref<1x384xf32, #tpu.memory_space<vmem>>, %arg5: memref<1x128xf32, #tpu.memory_space<vmem>>, %arg6: memref<8x8x128xf32, #tpu.memory_space<vmem>>, %arg7: memref<8x128xf32, #tpu.memory_space<vmem>>, %arg8: memref<64x384xf32, #tpu.memory_space<vmem>>, %arg9: memref<8x128xf32, #tpu.memory_space<vmem>>) attributes {dimension_semantics = [#tpu.dimension_semantics<arbitrary>], iteration_bounds = array<i64: 1>, scalar_prefetch = 0 : i64, scratch_operands = 2 : i64, tpu.core_type = #tpu.core_type<tc>, window_params = [{transform_indices = @transform_0, window_bounds = array<i64: 64, 32>}, {pipeline_mode = #tpu.pipeline_mode<synchronous>, transform_indices = @transform_1, window_bounds = array<i64: 32, 384>}, {pipeline_mode = #tpu.pipeline_mode<synchronous>, transform_indices = @transform_2, window_bounds = array<i64: 128, 384>}, {pipeline_mode = #tpu.pipeline_mode<synchronous>, transform_indices = @transform_3, window_bounds = array<i64: 1, 384>}, {pipeline_mode = #tpu.pipeline_mode<synchronous>, transform_indices = @transform_4, window_bounds = array<i64: 1, 128>}, {transform_indices = @transform_5, window_bounds = array<i64: 8, 8, 128>}, {pipeline_mode = #tpu.pipeline_mode<synchronous>, transform_indices = @transform_6, window_bounds = array<i64: 8, 128>}]} {
    %c0_i32 = arith.constant 0 : i32
    %0 = arith.cmpi eq, %arg0, %c0_i32 : i32
    %1 = arith.extui %0 : i1 to i32
    %c0_i32_0 = arith.constant 0 : i32
    %2 = arith.cmpi ne, %1, %c0_i32_0 : i32
    scf.if %2 {
      %cst_89 = arith.constant 0.000000e+00 : f32
      %304 = vector.broadcast %cst_89 : f32 to vector<8x128xf32>
      %c0_90 = arith.constant 0 : index
      %c0_91 = arith.constant 0 : index
      %305 = vector.load %arg9[%c0_90, %c0_91] : memref<8x128xf32, #tpu.memory_space<vmem>>, vector<8x128xf32>
      tpu.vector_store %arg9[%c0_90, %c0_91], %304 {strides = array<i32>} : memref<8x128xf32, #tpu.memory_space<vmem>>, vector<8x128xf32>,
    } else {
    }
    %c0 = arith.constant 0 : index
    %c0_1 = arith.constant 0 : index
    %3 = vector.load %arg1[%c0, %c0_1] : memref<64x32xf32, #tpu.memory_space<vmem>>, vector<64x32xf32>
    %c0_2 = arith.constant 0 : index
    %c0_3 = arith.constant 0 : index
    %4 = vector.load %arg2[%c0_2, %c0_3] : memref<32x384xf32, #tpu.memory_space<vmem>>, vector<32x384xf32>
    %cst = arith.constant dense<0.000000e+00> : vector<64x384xf32>
    %5 = tpu.matmul %3, %4, %cst {dimension_numbers = #tpu.dot_dimension_numbers<[1], [0], [0], [1], [0, 0, 1, 1], [], []>} : vector<64x32xf32>, vector<32x384xf32>, vector<64x384xf32> -> vector<64x384xf32>
    %c0_4 = arith.constant 0 : index
    %c0_5 = arith.constant 0 : index
    %6 = vector.load %arg4[%c0_4, %c0_5] : memref<1x384xf32, #tpu.memory_space<vmem>>, vector<1x384xf32>
    %7 = vector.broadcast %6 : vector<1x384xf32> to vector<64x384xf32>
    %8 = arith.addf %5, %7 : vector<64x384xf32>
    %c0_6 = arith.constant 0 : index
    %c0_7 = arith.constant 0 : index
    %9 = vector.load %arg8[%c0_6, %c0_7] : memref<64x384xf32, #tpu.memory_space<vmem>>, vector<64x384xf32>
    tpu.vector_store %arg8[%c0_6, %c0_7], %8 {strides = array<i32>} : memref<64x384xf32, #tpu.memory_space<vmem>>, vector<64x384xf32>,
    %c0_8 = arith.constant 0 : index
    %c0_9 = arith.constant 0 : index
    %10 = vector.load %arg5[%c0_8, %c0_9] : memref<1x128xf32, #tpu.memory_space<vmem>>, vector<1x128xf32>
    %c0_10 = arith.constant 0 : index
    %c0_11 = arith.constant 0 : index
    %11 = vector.load %arg9[%c0_10, %c0_11] : memref<8x128xf32, #tpu.memory_space<vmem>>, vector<8x128xf32>
    %c0_i32_12 = arith.constant 0 : i32
    %c8_i32 = arith.constant 8 : i32
    %12 = arith.muli %c0_i32_12, %c8_i32 : i32
    %13 = tpu.assume_multiple %12, 8 : i32
    %14 = arith.index_cast %13 : i32 to index
    %c0_13 = arith.constant 0 : index
    %15 = vector.load %arg8[%14, %c0_13] : memref<64x384xf32, #tpu.memory_space<vmem>>, vector<8x384xf32>
    %c0_14 = arith.constant 0 : index
    %c0_15 = arith.constant 0 : index
    %16 = vector.load %arg3[%c0_14, %c0_15] : memref<128x384xf32, #tpu.memory_space<vmem>>, vector<128x384xf32>
    %cst_16 = arith.constant dense<0.000000e+00> : vector<8x384xf32>
    %17 = tpu.matmul %11, %16, %cst_16 {dimension_numbers = #tpu.dot_dimension_numbers<[1], [0], [0], [1], [0, 0, 1, 1], [], []>} : vector<8x128xf32>, vector<128x384xf32>, vector<8x384xf32> -> vector<8x384xf32>
    %18 = vector.extract_strided_slice %15 {offsets = [0, 0], sizes = [8, 128], strides = [1, 1]} : vector<8x384xf32> to vector<8x128xf32>
    %19 = vector.extract_strided_slice %17 {offsets = [0, 0], sizes = [8, 128], strides = [1, 1]} : vector<8x384xf32> to vector<8x128xf32>
    %20 = arith.addf %18, %19 : vector<8x128xf32>
    %21 = arith.negf %20 : vector<8x128xf32>
    %22 = math.exp %21 : vector<8x128xf32>
    %cst_17 = arith.constant 1.000000e+00 : f32
    %23 = vector.broadcast %cst_17 : f32 to vector<8x128xf32>
    %24 = arith.addf %23, %22 : vector<8x128xf32>
    %25 = arith.divf %23, %24 : vector<8x128xf32>
    %26 = vector.extract_strided_slice %15 {offsets = [0, 128], sizes = [8, 128], strides = [1, 1]} : vector<8x384xf32> to vector<8x128xf32>
    %27 = vector.extract_strided_slice %17 {offsets = [0, 128], sizes = [8, 128], strides = [1, 1]} : vector<8x384xf32> to vector<8x128xf32>
    %28 = arith.addf %26, %27 : vector<8x128xf32>
    %29 = arith.negf %28 : vector<8x128xf32>
    %30 = math.exp %29 : vector<8x128xf32>
    %cst_18 = arith.constant 1.000000e+00 : f32
    %31 = vector.broadcast %cst_18 : f32 to vector<8x128xf32>
    %32 = arith.addf %31, %30 : vector<8x128xf32>
    %33 = arith.divf %31, %32 : vector<8x128xf32>
    %34 = vector.extract_strided_slice %15 {offsets = [0, 256], sizes = [8, 128], strides = [1, 1]} : vector<8x384xf32> to vector<8x128xf32>
    %35 = vector.extract_strided_slice %17 {offsets = [0, 256], sizes = [8, 128], strides = [1, 1]} : vector<8x384xf32> to vector<8x128xf32>
    %36 = vector.broadcast %10 : vector<1x128xf32> to vector<8x128xf32>
    %37 = arith.addf %35, %36 : vector<8x128xf32>
    %38 = arith.mulf %25, %37 : vector<8x128xf32>
    %39 = arith.addf %34, %38 : vector<8x128xf32>
    %40 = math.tanh %39 : vector<8x128xf32>
    %41 = arith.subf %11, %40 : vector<8x128xf32>
    %42 = arith.mulf %33, %41 : vector<8x128xf32>
    %43 = arith.addf %40, %42 : vector<8x128xf32>
    %44 = arith.index_cast %c0_i32_12 : i32 to index
    %c0_19 = arith.constant 0 : index
    %c0_20 = arith.constant 0 : index
    %45 = vector.load %arg6[%44, %c0_19, %c0_20] : memref<8x8x128xf32, #tpu.memory_space<vmem>>, vector<1x8x128xf32>
    %46 = vector.shape_cast %45 : vector<1x8x128xf32> to vector<8x128xf32>
    %47 = vector.shape_cast %43 : vector<8x128xf32> to vector<1x8x128xf32>
    tpu.vector_store %arg6[%44, %c0_19, %c0_20], %47 {strides = array<i32>} : memref<8x8x128xf32, #tpu.memory_space<vmem>>, vector<1x8x128xf32>,
    %c1_i32 = arith.constant 1 : i32
    %c8_i32_21 = arith.constant 8 : i32
    %48 = arith.muli %c1_i32, %c8_i32_21 : i32
    %49 = tpu.assume_multiple %48, 8 : i32
    %50 = arith.index_cast %49 : i32 to index
    %c0_22 = arith.constant 0 : index
    %51 = vector.load %arg8[%50, %c0_22] : memref<64x384xf32, #tpu.memory_space<vmem>>, vector<8x384xf32>
    %c0_23 = arith.constant 0 : index
    %c0_24 = arith.constant 0 : index
    %52 = vector.load %arg3[%c0_23, %c0_24] : memref<128x384xf32, #tpu.memory_space<vmem>>, vector<128x384xf32>
    %cst_25 = arith.constant dense<0.000000e+00> : vector<8x384xf32>
    %53 = tpu.matmul %43, %52, %cst_25 {dimension_numbers = #tpu.dot_dimension_numbers<[1], [0], [0], [1], [0, 0, 1, 1], [], []>} : vector<8x128xf32>, vector<128x384xf32>, vector<8x384xf32> -> vector<8x384xf32>
    %54 = vector.extract_strided_slice %51 {offsets = [0, 0], sizes = [8, 128], strides = [1, 1]} : vector<8x384xf32> to vector<8x128xf32>
    %55 = vector.extract_strided_slice %53 {offsets = [0, 0], sizes = [8, 128], strides = [1, 1]} : vector<8x384xf32> to vector<8x128xf32>
    %56 = arith.addf %54, %55 : vector<8x128xf32>
    %57 = arith.negf %56 : vector<8x128xf32>
    %58 = math.exp %57 : vector<8x128xf32>
    %cst_26 = arith.constant 1.000000e+00 : f32
    %59 = vector.broadcast %cst_26 : f32 to vector<8x128xf32>
    %60 = arith.addf %59, %58 : vector<8x128xf32>
    %61 = arith.divf %59, %60 : vector<8x128xf32>
    %62 = vector.extract_strided_slice %51 {offsets = [0, 128], sizes = [8, 128], strides = [1, 1]} : vector<8x384xf32> to vector<8x128xf32>
    %63 = vector.extract_strided_slice %53 {offsets = [0, 128], sizes = [8, 128], strides = [1, 1]} : vector<8x384xf32> to vector<8x128xf32>
    %64 = arith.addf %62, %63 : vector<8x128xf32>
    %65 = arith.negf %64 : vector<8x128xf32>
    %66 = math.exp %65 : vector<8x128xf32>
    %cst_27 = arith.constant 1.000000e+00 : f32
    %67 = vector.broadcast %cst_27 : f32 to vector<8x128xf32>
    %68 = arith.addf %67, %66 : vector<8x128xf32>
    %69 = arith.divf %67, %68 : vector<8x128xf32>
    %70 = vector.extract_strided_slice %51 {offsets = [0, 256], sizes = [8, 128], strides = [1, 1]} : vector<8x384xf32> to vector<8x128xf32>
    %71 = vector.extract_strided_slice %53 {offsets = [0, 256], sizes = [8, 128], strides = [1, 1]} : vector<8x384xf32> to vector<8x128xf32>
    %72 = vector.broadcast %10 : vector<1x128xf32> to vector<8x128xf32>
    %73 = arith.addf %71, %72 : vector<8x128xf32>
    %74 = arith.mulf %61, %73 : vector<8x128xf32>
    %75 = arith.addf %70, %74 : vector<8x128xf32>
    %76 = math.tanh %75 : vector<8x128xf32>
    %77 = arith.subf %43, %76 : vector<8x128xf32>
    %78 = arith.mulf %69, %77 : vector<8x128xf32>
    %79 = arith.addf %76, %78 : vector<8x128xf32>
    %80 = arith.index_cast %c1_i32 : i32 to index
    %c0_28 = arith.constant 0 : index
    %c0_29 = arith.constant 0 : index
    %81 = vector.load %arg6[%80, %c0_28, %c0_29] : memref<8x8x128xf32, #tpu.memory_space<vmem>>, vector<1x8x128xf32>
    %82 = vector.shape_cast %81 : vector<1x8x128xf32> to vector<8x128xf32>
    %83 = vector.shape_cast %79 : vector<8x128xf32> to vector<1x8x128xf32>
    tpu.vector_store %arg6[%80, %c0_28, %c0_29], %83 {strides = array<i32>} : memref<8x8x128xf32, #tpu.memory_space<vmem>>, vector<1x8x128xf32>,
    %c2_i32 = arith.constant 2 : i32
    %c8_i32_30 = arith.constant 8 : i32
    %84 = arith.muli %c2_i32, %c8_i32_30 : i32
    %85 = tpu.assume_multiple %84, 8 : i32
    %86 = arith.index_cast %85 : i32 to index
    %c0_31 = arith.constant 0 : index
    %87 = vector.load %arg8[%86, %c0_31] : memref<64x384xf32, #tpu.memory_space<vmem>>, vector<8x384xf32>
    %c0_32 = arith.constant 0 : index
    %c0_33 = arith.constant 0 : index
    %88 = vector.load %arg3[%c0_32, %c0_33] : memref<128x384xf32, #tpu.memory_space<vmem>>, vector<128x384xf32>
    %cst_34 = arith.constant dense<0.000000e+00> : vector<8x384xf32>
    %89 = tpu.matmul %79, %88, %cst_34 {dimension_numbers = #tpu.dot_dimension_numbers<[1], [0], [0], [1], [0, 0, 1, 1], [], []>} : vector<8x128xf32>, vector<128x384xf32>, vector<8x384xf32> -> vector<8x384xf32>
    %90 = vector.extract_strided_slice %87 {offsets = [0, 0], sizes = [8, 128], strides = [1, 1]} : vector<8x384xf32> to vector<8x128xf32>
    %91 = vector.extract_strided_slice %89 {offsets = [0, 0], sizes = [8, 128], strides = [1, 1]} : vector<8x384xf32> to vector<8x128xf32>
    %92 = arith.addf %90, %91 : vector<8x128xf32>
    %93 = arith.negf %92 : vector<8x128xf32>
    %94 = math.exp %93 : vector<8x128xf32>
    %cst_35 = arith.constant 1.000000e+00 : f32
    %95 = vector.broadcast %cst_35 : f32 to vector<8x128xf32>
    %96 = arith.addf %95, %94 : vector<8x128xf32>
    %97 = arith.divf %95, %96 : vector<8x128xf32>
    %98 = vector.extract_strided_slice %87 {offsets = [0, 128], sizes = [8, 128], strides = [1, 1]} : vector<8x384xf32> to vector<8x128xf32>
    %99 = vector.extract_strided_slice %89 {offsets = [0, 128], sizes = [8, 128], strides = [1, 1]} : vector<8x384xf32> to vector<8x128xf32>
    %100 = arith.addf %98, %99 : vector<8x128xf32>
    %101 = arith.negf %100 : vector<8x128xf32>
    %102 = math.exp %101 : vector<8x128xf32>
    %cst_36 = arith.constant 1.000000e+00 : f32
    %103 = vector.broadcast %cst_36 : f32 to vector<8x128xf32>
    %104 = arith.addf %103, %102 : vector<8x128xf32>
    %105 = arith.divf %103, %104 : vector<8x128xf32>
    %106 = vector.extract_strided_slice %87 {offsets = [0, 256], sizes = [8, 128], strides = [1, 1]} : vector<8x384xf32> to vector<8x128xf32>
    %107 = vector.extract_strided_slice %89 {offsets = [0, 256], sizes = [8, 128], strides = [1, 1]} : vector<8x384xf32> to vector<8x128xf32>
    %108 = vector.broadcast %10 : vector<1x128xf32> to vector<8x128xf32>
    %109 = arith.addf %107, %108 : vector<8x128xf32>
    %110 = arith.mulf %97, %109 : vector<8x128xf32>
    %111 = arith.addf %106, %110 : vector<8x128xf32>
    %112 = math.tanh %111 : vector<8x128xf32>
    %113 = arith.subf %79, %112 : vector<8x128xf32>
    %114 = arith.mulf %105, %113 : vector<8x128xf32>
    %115 = arith.addf %112, %114 : vector<8x128xf32>
    %116 = arith.index_cast %c2_i32 : i32 to index
    %c0_37 = arith.constant 0 : index
    %c0_38 = arith.constant 0 : index
    %117 = vector.load %arg6[%116, %c0_37, %c0_38] : memref<8x8x128xf32, #tpu.memory_space<vmem>>, vector<1x8x128xf32>
    %118 = vector.shape_cast %117 : vector<1x8x128xf32> to vector<8x128xf32>
    %119 = vector.shape_cast %115 : vector<8x128xf32> to vector<1x8x128xf32>
    tpu.vector_store %arg6[%116, %c0_37, %c0_38], %119 {strides = array<i32>} : memref<8x8x128xf32, #tpu.memory_space<vmem>>, vector<1x8x128xf32>,
    %c3_i32 = arith.constant 3 : i32
    %c8_i32_39 = arith.constant 8 : i32
    %120 = arith.muli %c3_i32, %c8_i32_39 : i32
    %121 = tpu.assume_multiple %120, 8 : i32
    %122 = arith.index_cast %121 : i32 to index
    %c0_40 = arith.constant 0 : index
    %123 = vector.load %arg8[%122, %c0_40] : memref<64x384xf32, #tpu.memory_space<vmem>>, vector<8x384xf32>
    %c0_41 = arith.constant 0 : index
    %c0_42 = arith.constant 0 : index
    %124 = vector.load %arg3[%c0_41, %c0_42] : memref<128x384xf32, #tpu.memory_space<vmem>>, vector<128x384xf32>
    %cst_43 = arith.constant dense<0.000000e+00> : vector<8x384xf32>
    %125 = tpu.matmul %115, %124, %cst_43 {dimension_numbers = #tpu.dot_dimension_numbers<[1], [0], [0], [1], [0, 0, 1, 1], [], []>} : vector<8x128xf32>, vector<128x384xf32>, vector<8x384xf32> -> vector<8x384xf32>
    %126 = vector.extract_strided_slice %123 {offsets = [0, 0], sizes = [8, 128], strides = [1, 1]} : vector<8x384xf32> to vector<8x128xf32>
    %127 = vector.extract_strided_slice %125 {offsets = [0, 0], sizes = [8, 128], strides = [1, 1]} : vector<8x384xf32> to vector<8x128xf32>
    %128 = arith.addf %126, %127 : vector<8x128xf32>
    %129 = arith.negf %128 : vector<8x128xf32>
    %130 = math.exp %129 : vector<8x128xf32>
    %cst_44 = arith.constant 1.000000e+00 : f32
    %131 = vector.broadcast %cst_44 : f32 to vector<8x128xf32>
    %132 = arith.addf %131, %130 : vector<8x128xf32>
    %133 = arith.divf %131, %132 : vector<8x128xf32>
    %134 = vector.extract_strided_slice %123 {offsets = [0, 128], sizes = [8, 128], strides = [1, 1]} : vector<8x384xf32> to vector<8x128xf32>
    %135 = vector.extract_strided_slice %125 {offsets = [0, 128], sizes = [8, 128], strides = [1, 1]} : vector<8x384xf32> to vector<8x128xf32>
    %136 = arith.addf %134, %135 : vector<8x128xf32>
    %137 = arith.negf %136 : vector<8x128xf32>
    %138 = math.exp %137 : vector<8x128xf32>
    %cst_45 = arith.constant 1.000000e+00 : f32
    %139 = vector.broadcast %cst_45 : f32 to vector<8x128xf32>
    %140 = arith.addf %139, %138 : vector<8x128xf32>
    %141 = arith.divf %139, %140 : vector<8x128xf32>
    %142 = vector.extract_strided_slice %123 {offsets = [0, 256], sizes = [8, 128], strides = [1, 1]} : vector<8x384xf32> to vector<8x128xf32>
    %143 = vector.extract_strided_slice %125 {offsets = [0, 256], sizes = [8, 128], strides = [1, 1]} : vector<8x384xf32> to vector<8x128xf32>
    %144 = vector.broadcast %10 : vector<1x128xf32> to vector<8x128xf32>
    %145 = arith.addf %143, %144 : vector<8x128xf32>
    %146 = arith.mulf %133, %145 : vector<8x128xf32>
    %147 = arith.addf %142, %146 : vector<8x128xf32>
    %148 = math.tanh %147 : vector<8x128xf32>
    %149 = arith.subf %115, %148 : vector<8x128xf32>
    %150 = arith.mulf %141, %149 : vector<8x128xf32>
    %151 = arith.addf %148, %150 : vector<8x128xf32>
    %152 = arith.index_cast %c3_i32 : i32 to index
    %c0_46 = arith.constant 0 : index
    %c0_47 = arith.constant 0 : index
    %153 = vector.load %arg6[%152, %c0_46, %c0_47] : memref<8x8x128xf32, #tpu.memory_space<vmem>>, vector<1x8x128xf32>
    %154 = vector.shape_cast %153 : vector<1x8x128xf32> to vector<8x128xf32>
    %155 = vector.shape_cast %151 : vector<8x128xf32> to vector<1x8x128xf32>
    tpu.vector_store %arg6[%152, %c0_46, %c0_47], %155 {strides = array<i32>} : memref<8x8x128xf32, #tpu.memory_space<vmem>>, vector<1x8x128xf32>,
    %c4_i32 = arith.constant 4 : i32
    %c8_i32_48 = arith.constant 8 : i32
    %156 = arith.muli %c4_i32, %c8_i32_48 : i32
    %157 = tpu.assume_multiple %156, 8 : i32
    %158 = arith.index_cast %157 : i32 to index
    %c0_49 = arith.constant 0 : index
    %159 = vector.load %arg8[%158, %c0_49] : memref<64x384xf32, #tpu.memory_space<vmem>>, vector<8x384xf32>
    %c0_50 = arith.constant 0 : index
    %c0_51 = arith.constant 0 : index
    %160 = vector.load %arg3[%c0_50, %c0_51] : memref<128x384xf32, #tpu.memory_space<vmem>>, vector<128x384xf32>
    %cst_52 = arith.constant dense<0.000000e+00> : vector<8x384xf32>
    %161 = tpu.matmul %151, %160, %cst_52 {dimension_numbers = #tpu.dot_dimension_numbers<[1], [0], [0], [1], [0, 0, 1, 1], [], []>} : vector<8x128xf32>, vector<128x384xf32>, vector<8x384xf32> -> vector<8x384xf32>
    %162 = vector.extract_strided_slice %159 {offsets = [0, 0], sizes = [8, 128], strides = [1, 1]} : vector<8x384xf32> to vector<8x128xf32>
    %163 = vector.extract_strided_slice %161 {offsets = [0, 0], sizes = [8, 128], strides = [1, 1]} : vector<8x384xf32> to vector<8x128xf32>
    %164 = arith.addf %162, %163 : vector<8x128xf32>
    %165 = arith.negf %164 : vector<8x128xf32>
    %166 = math.exp %165 : vector<8x128xf32>
    %cst_53 = arith.constant 1.000000e+00 : f32
    %167 = vector.broadcast %cst_53 : f32 to vector<8x128xf32>
    %168 = arith.addf %167, %166 : vector<8x128xf32>
    %169 = arith.divf %167, %168 : vector<8x128xf32>
    %170 = vector.extract_strided_slice %159 {offsets = [0, 128], sizes = [8, 128], strides = [1, 1]} : vector<8x384xf32> to vector<8x128xf32>
    %171 = vector.extract_strided_slice %161 {offsets = [0, 128], sizes = [8, 128], strides = [1, 1]} : vector<8x384xf32> to vector<8x128xf32>
    %172 = arith.addf %170, %171 : vector<8x128xf32>
    %173 = arith.negf %172 : vector<8x128xf32>
    %174 = math.exp %173 : vector<8x128xf32>
    %cst_54 = arith.constant 1.000000e+00 : f32
    %175 = vector.broadcast %cst_54 : f32 to vector<8x128xf32>
    %176 = arith.addf %175, %174 : vector<8x128xf32>
    %177 = arith.divf %175, %176 : vector<8x128xf32>
    %178 = vector.extract_strided_slice %159 {offsets = [0, 256], sizes = [8, 128], strides = [1, 1]} : vector<8x384xf32> to vector<8x128xf32>
    %179 = vector.extract_strided_slice %161 {offsets = [0, 256], sizes = [8, 128], strides = [1, 1]} : vector<8x384xf32> to vector<8x128xf32>
    %180 = vector.broadcast %10 : vector<1x128xf32> to vector<8x128xf32>
    %181 = arith.addf %179, %180 : vector<8x128xf32>
    %182 = arith.mulf %169, %181 : vector<8x128xf32>
    %183 = arith.addf %178, %182 : vector<8x128xf32>
    %184 = math.tanh %183 : vector<8x128xf32>
    %185 = arith.subf %151, %184 : vector<8x128xf32>
    %186 = arith.mulf %177, %185 : vector<8x128xf32>
    %187 = arith.addf %184, %186 : vector<8x128xf32>
    %188 = arith.index_cast %c4_i32 : i32 to index
    %c0_55 = arith.constant 0 : index
    %c0_56 = arith.constant 0 : index
    %189 = vector.load %arg6[%188, %c0_55, %c0_56] : memref<8x8x128xf32, #tpu.memory_space<vmem>>, vector<1x8x128xf32>
    %190 = vector.shape_cast %189 : vector<1x8x128xf32> to vector<8x128xf32>
    %191 = vector.shape_cast %187 : vector<8x128xf32> to vector<1x8x128xf32>
    tpu.vector_store %arg6[%188, %c0_55, %c0_56], %191 {strides = array<i32>} : memref<8x8x128xf32, #tpu.memory_space<vmem>>, vector<1x8x128xf32>,
    %c5_i32 = arith.constant 5 : i32
    %c8_i32_57 = arith.constant 8 : i32
    %192 = arith.muli %c5_i32, %c8_i32_57 : i32
    %193 = tpu.assume_multiple %192, 8 : i32
    %194 = arith.index_cast %193 : i32 to index
    %c0_58 = arith.constant 0 : index
    %195 = vector.load %arg8[%194, %c0_58] : memref<64x384xf32, #tpu.memory_space<vmem>>, vector<8x384xf32>
    %c0_59 = arith.constant 0 : index
    %c0_60 = arith.constant 0 : index
    %196 = vector.load %arg3[%c0_59, %c0_60] : memref<128x384xf32, #tpu.memory_space<vmem>>, vector<128x384xf32>
    %cst_61 = arith.constant dense<0.000000e+00> : vector<8x384xf32>
    %197 = tpu.matmul %187, %196, %cst_61 {dimension_numbers = #tpu.dot_dimension_numbers<[1], [0], [0], [1], [0, 0, 1, 1], [], []>} : vector<8x128xf32>, vector<128x384xf32>, vector<8x384xf32> -> vector<8x384xf32>
    %198 = vector.extract_strided_slice %195 {offsets = [0, 0], sizes = [8, 128], strides = [1, 1]} : vector<8x384xf32> to vector<8x128xf32>
    %199 = vector.extract_strided_slice %197 {offsets = [0, 0], sizes = [8, 128], strides = [1, 1]} : vector<8x384xf32> to vector<8x128xf32>
    %200 = arith.addf %198, %199 : vector<8x128xf32>
    %201 = arith.negf %200 : vector<8x128xf32>
    %202 = math.exp %201 : vector<8x128xf32>
    %cst_62 = arith.constant 1.000000e+00 : f32
    %203 = vector.broadcast %cst_62 : f32 to vector<8x128xf32>
    %204 = arith.addf %203, %202 : vector<8x128xf32>
    %205 = arith.divf %203, %204 : vector<8x128xf32>
    %206 = vector.extract_strided_slice %195 {offsets = [0, 128], sizes = [8, 128], strides = [1, 1]} : vector<8x384xf32> to vector<8x128xf32>
    %207 = vector.extract_strided_slice %197 {offsets = [0, 128], sizes = [8, 128], strides = [1, 1]} : vector<8x384xf32> to vector<8x128xf32>
    %208 = arith.addf %206, %207 : vector<8x128xf32>
    %209 = arith.negf %208 : vector<8x128xf32>
    %210 = math.exp %209 : vector<8x128xf32>
    %cst_63 = arith.constant 1.000000e+00 : f32
    %211 = vector.broadcast %cst_63 : f32 to vector<8x128xf32>
    %212 = arith.addf %211, %210 : vector<8x128xf32>
    %213 = arith.divf %211, %212 : vector<8x128xf32>
    %214 = vector.extract_strided_slice %195 {offsets = [0, 256], sizes = [8, 128], strides = [1, 1]} : vector<8x384xf32> to vector<8x128xf32>
    %215 = vector.extract_strided_slice %197 {offsets = [0, 256], sizes = [8, 128], strides = [1, 1]} : vector<8x384xf32> to vector<8x128xf32>
    %216 = vector.broadcast %10 : vector<1x128xf32> to vector<8x128xf32>
    %217 = arith.addf %215, %216 : vector<8x128xf32>
    %218 = arith.mulf %205, %217 : vector<8x128xf32>
    %219 = arith.addf %214, %218 : vector<8x128xf32>
    %220 = math.tanh %219 : vector<8x128xf32>
    %221 = arith.subf %187, %220 : vector<8x128xf32>
    %222 = arith.mulf %213, %221 : vector<8x128xf32>
    %223 = arith.addf %220, %222 : vector<8x128xf32>
    %224 = arith.index_cast %c5_i32 : i32 to index
    %c0_64 = arith.constant 0 : index
    %c0_65 = arith.constant 0 : index
    %225 = vector.load %arg6[%224, %c0_64, %c0_65] : memref<8x8x128xf32, #tpu.memory_space<vmem>>, vector<1x8x128xf32>
    %226 = vector.shape_cast %225 : vector<1x8x128xf32> to vector<8x128xf32>
    %227 = vector.shape_cast %223 : vector<8x128xf32> to vector<1x8x128xf32>
    tpu.vector_store %arg6[%224, %c0_64, %c0_65], %227 {strides = array<i32>} : memref<8x8x128xf32, #tpu.memory_space<vmem>>, vector<1x8x128xf32>,
    %c6_i32 = arith.constant 6 : i32
    %c8_i32_66 = arith.constant 8 : i32
    %228 = arith.muli %c6_i32, %c8_i32_66 : i32
    %229 = tpu.assume_multiple %228, 8 : i32
    %230 = arith.index_cast %229 : i32 to index
    %c0_67 = arith.constant 0 : index
    %231 = vector.load %arg8[%230, %c0_67] : memref<64x384xf32, #tpu.memory_space<vmem>>, vector<8x384xf32>
    %c0_68 = arith.constant 0 : index
    %c0_69 = arith.constant 0 : index
    %232 = vector.load %arg3[%c0_68, %c0_69] : memref<128x384xf32, #tpu.memory_space<vmem>>, vector<128x384xf32>
    %cst_70 = arith.constant dense<0.000000e+00> : vector<8x384xf32>
    %233 = tpu.matmul %223, %232, %cst_70 {dimension_numbers = #tpu.dot_dimension_numbers<[1], [0], [0], [1], [0, 0, 1, 1], [], []>} : vector<8x128xf32>, vector<128x384xf32>, vector<8x384xf32> -> vector<8x384xf32>
    %234 = vector.extract_strided_slice %231 {offsets = [0, 0], sizes = [8, 128], strides = [1, 1]} : vector<8x384xf32> to vector<8x128xf32>
    %235 = vector.extract_strided_slice %233 {offsets = [0, 0], sizes = [8, 128], strides = [1, 1]} : vector<8x384xf32> to vector<8x128xf32>
    %236 = arith.addf %234, %235 : vector<8x128xf32>
    %237 = arith.negf %236 : vector<8x128xf32>
    %238 = math.exp %237 : vector<8x128xf32>
    %cst_71 = arith.constant 1.000000e+00 : f32
    %239 = vector.broadcast %cst_71 : f32 to vector<8x128xf32>
    %240 = arith.addf %239, %238 : vector<8x128xf32>
    %241 = arith.divf %239, %240 : vector<8x128xf32>
    %242 = vector.extract_strided_slice %231 {offsets = [0, 128], sizes = [8, 128], strides = [1, 1]} : vector<8x384xf32> to vector<8x128xf32>
    %243 = vector.extract_strided_slice %233 {offsets = [0, 128], sizes = [8, 128], strides = [1, 1]} : vector<8x384xf32> to vector<8x128xf32>
    %244 = arith.addf %242, %243 : vector<8x128xf32>
    %245 = arith.negf %244 : vector<8x128xf32>
    %246 = math.exp %245 : vector<8x128xf32>
    %cst_72 = arith.constant 1.000000e+00 : f32
    %247 = vector.broadcast %cst_72 : f32 to vector<8x128xf32>
    %248 = arith.addf %247, %246 : vector<8x128xf32>
    %249 = arith.divf %247, %248 : vector<8x128xf32>
    %250 = vector.extract_strided_slice %231 {offsets = [0, 256], sizes = [8, 128], strides = [1, 1]} : vector<8x384xf32> to vector<8x128xf32>
    %251 = vector.extract_strided_slice %233 {offsets = [0, 256], sizes = [8, 128], strides = [1, 1]} : vector<8x384xf32> to vector<8x128xf32>
    %252 = vector.broadcast %10 : vector<1x128xf32> to vector<8x128xf32>
    %253 = arith.addf %251, %252 : vector<8x128xf32>
    %254 = arith.mulf %241, %253 : vector<8x128xf32>
    %255 = arith.addf %250, %254 : vector<8x128xf32>
    %256 = math.tanh %255 : vector<8x128xf32>
    %257 = arith.subf %223, %256 : vector<8x128xf32>
    %258 = arith.mulf %249, %257 : vector<8x128xf32>
    %259 = arith.addf %256, %258 : vector<8x128xf32>
    %260 = arith.index_cast %c6_i32 : i32 to index
    %c0_73 = arith.constant 0 : index
    %c0_74 = arith.constant 0 : index
    %261 = vector.load %arg6[%260, %c0_73, %c0_74] : memref<8x8x128xf32, #tpu.memory_space<vmem>>, vector<1x8x128xf32>
    %262 = vector.shape_cast %261 : vector<1x8x128xf32> to vector<8x128xf32>
    %263 = vector.shape_cast %259 : vector<8x128xf32> to vector<1x8x128xf32>
    tpu.vector_store %arg6[%260, %c0_73, %c0_74], %263 {strides = array<i32>} : memref<8x8x128xf32, #tpu.memory_space<vmem>>, vector<1x8x128xf32>,
    %c7_i32 = arith.constant 7 : i32
    %c8_i32_75 = arith.constant 8 : i32
    %264 = arith.muli %c7_i32, %c8_i32_75 : i32
    %265 = tpu.assume_multiple %264, 8 : i32
    %266 = arith.index_cast %265 : i32 to index
    %c0_76 = arith.constant 0 : index
    %267 = vector.load %arg8[%266, %c0_76] : memref<64x384xf32, #tpu.memory_space<vmem>>, vector<8x384xf32>
    %c0_77 = arith.constant 0 : index
    %c0_78 = arith.constant 0 : index
    %268 = vector.load %arg3[%c0_77, %c0_78] : memref<128x384xf32, #tpu.memory_space<vmem>>, vector<128x384xf32>
    %cst_79 = arith.constant dense<0.000000e+00> : vector<8x384xf32>
    %269 = tpu.matmul %259, %268, %cst_79 {dimension_numbers = #tpu.dot_dimension_numbers<[1], [0], [0], [1], [0, 0, 1, 1], [], []>} : vector<8x128xf32>, vector<128x384xf32>, vector<8x384xf32> -> vector<8x384xf32>
    %270 = vector.extract_strided_slice %267 {offsets = [0, 0], sizes = [8, 128], strides = [1, 1]} : vector<8x384xf32> to vector<8x128xf32>
    %271 = vector.extract_strided_slice %269 {offsets = [0, 0], sizes = [8, 128], strides = [1, 1]} : vector<8x384xf32> to vector<8x128xf32>
    %272 = arith.addf %270, %271 : vector<8x128xf32>
    %273 = arith.negf %272 : vector<8x128xf32>
    %274 = math.exp %273 : vector<8x128xf32>
    %cst_80 = arith.constant 1.000000e+00 : f32
    %275 = vector.broadcast %cst_80 : f32 to vector<8x128xf32>
    %276 = arith.addf %275, %274 : vector<8x128xf32>
    %277 = arith.divf %275, %276 : vector<8x128xf32>
    %278 = vector.extract_strided_slice %267 {offsets = [0, 128], sizes = [8, 128], strides = [1, 1]} : vector<8x384xf32> to vector<8x128xf32>
    %279 = vector.extract_strided_slice %269 {offsets = [0, 128], sizes = [8, 128], strides = [1, 1]} : vector<8x384xf32> to vector<8x128xf32>
    %280 = arith.addf %278, %279 : vector<8x128xf32>
    %281 = arith.negf %280 : vector<8x128xf32>
    %282 = math.exp %281 : vector<8x128xf32>
    %cst_81 = arith.constant 1.000000e+00 : f32
    %283 = vector.broadcast %cst_81 : f32 to vector<8x128xf32>
    %284 = arith.addf %283, %282 : vector<8x128xf32>
    %285 = arith.divf %283, %284 : vector<8x128xf32>
    %286 = vector.extract_strided_slice %267 {offsets = [0, 256], sizes = [8, 128], strides = [1, 1]} : vector<8x384xf32> to vector<8x128xf32>
    %287 = vector.extract_strided_slice %269 {offsets = [0, 256], sizes = [8, 128], strides = [1, 1]} : vector<8x384xf32> to vector<8x128xf32>
    %288 = vector.broadcast %10 : vector<1x128xf32> to vector<8x128xf32>
    %289 = arith.addf %287, %288 : vector<8x128xf32>
    %290 = arith.mulf %277, %289 : vector<8x128xf32>
    %291 = arith.addf %286, %290 : vector<8x128xf32>
    %292 = math.tanh %291 : vector<8x128xf32>
    %293 = arith.subf %259, %292 : vector<8x128xf32>
    %294 = arith.mulf %285, %293 : vector<8x128xf32>
    %295 = arith.addf %292, %294 : vector<8x128xf32>
    %296 = arith.index_cast %c7_i32 : i32 to index
    %c0_82 = arith.constant 0 : index
    %c0_83 = arith.constant 0 : index
    %297 = vector.load %arg6[%296, %c0_82, %c0_83] : memref<8x8x128xf32, #tpu.memory_space<vmem>>, vector<1x8x128xf32>
    %298 = vector.shape_cast %297 : vector<1x8x128xf32> to vector<8x128xf32>
    %299 = vector.shape_cast %295 : vector<8x128xf32> to vector<1x8x128xf32>
    tpu.vector_store %arg6[%296, %c0_82, %c0_83], %299 {strides = array<i32>} : memref<8x8x128xf32, #tpu.memory_space<vmem>>, vector<1x8x128xf32>,
    %c8_i32_84 = arith.constant 8 : i32
    %c0_85 = arith.constant 0 : index
    %c0_86 = arith.constant 0 : index
    %300 = vector.load %arg9[%c0_85, %c0_86] : memref<8x128xf32, #tpu.memory_space<vmem>>, vector<8x128xf32>
    tpu.vector_store %arg9[%c0_85, %c0_86], %295 {strides = array<i32>} : memref<8x128xf32, #tpu.memory_space<vmem>>, vector<8x128xf32>,
    %c0_i32_87 = arith.constant 0 : i32
    %301 = arith.cmpi eq, %arg0, %c0_i32_87 : i32
    %302 = arith.extui %301 : i1 to i32
    %c0_i32_88 = arith.constant 0 : i32
    %303 = arith.cmpi ne, %302, %c0_i32_88 : i32
    scf.if %303 {
      %c0_89 = arith.constant 0 : index
      %c0_90 = arith.constant 0 : index
      %304 = vector.load %arg9[%c0_89, %c0_90] : memref<8x128xf32, #tpu.memory_space<vmem>>, vector<8x128xf32>
      %c0_91 = arith.constant 0 : index
      %c0_92 = arith.constant 0 : index
      %305 = vector.load %arg7[%c0_91, %c0_92] : memref<8x128xf32, #tpu.memory_space<vmem>>, vector<8x128xf32>
      tpu.vector_store %arg7[%c0_91, %c0_92], %304 {strides = array<i32>} : memref<8x128xf32, #tpu.memory_space<vmem>>, vector<8x128xf32>,
    } else {
    }
    return
  }
  func.func @transform_0(%arg0: i32) -> (i32, i32) {
    %c0_i32 = arith.constant 0 : i32
    %c0_i32_0 = arith.constant 0 : i32
    return %arg0, %c0_i32 : i32, i32
  }
  func.func @transform_1(%arg0: i32) -> (i32, i32) {
    %c0_i32 = arith.constant 0 : i32
    %c0_i32_0 = arith.constant 0 : i32
    %c0_i32_1 = arith.constant 0 : i32
    return %c0_i32, %c0_i32_0 : i32, i32
  }
  func.func @transform_2(%arg0: i32) -> (i32, i32) {
    %c0_i32 = arith.constant 0 : i32
    %c0_i32_0 = arith.constant 0 : i32
    %c0_i32_1 = arith.constant 0 : i32
    return %c0_i32, %c0_i32_0 : i32, i32
  }
  func.func @transform_3(%arg0: i32) -> (i32, i32) {
    %c0_i32 = arith.constant 0 : i32
    %c0_i32_0 = arith.constant 0 : i32
    %c0_i32_1 = arith.constant 0 : i32
    return %c0_i32, %c0_i32_0 : i32, i32
  }
  func.func @transform_4(%arg0: i32) -> (i32, i32) {
    %c0_i32 = arith.constant 0 : i32
    %c0_i32_0 = arith.constant 0 : i32
    %c0_i32_1 = arith.constant 0 : i32
    return %c0_i32, %c0_i32_0 : i32, i32
  }
  func.func @transform_5(%arg0: i32) -> (i32, i32, i32) {
    %c0_i32 = arith.constant 0 : i32
    %c0_i32_0 = arith.constant 0 : i32
    %c0_i32_1 = arith.constant 0 : i32
    return %arg0, %c0_i32, %c0_i32_0 : i32, i32, i32
  }
  func.func @transform_6(%arg0: i32) -> (i32, i32) {
    %c0_i32 = arith.constant 0 : i32
    %c0_i32_0 = arith.constant 0 : i32
    %c0_i32_1 = arith.constant 0 : i32
    return %c0_i32, %c0_i32_0 : i32, i32
  }
}

</mosaic_0001>

<llo_original>
// kernel: tpu_custom_call.1
$region0: #{tpu_custom_call.1}
  #allocation0 [shape = 'u32[]', space=smem, size = 0x4, offset = 0x4, fixed_abs, tag = 'smem constant byte address 0x4 - core index']
  #allocation1 [shape = 'u32[144,128]{1,0:T(1,128)}', space=vmem, size = 0x12000, scoped, tag = 'internal scratch']
  #allocation2 [shape = 'f32[64,384]{1,0:T(8,128)}', space=vmem, size = 0x18000, scoped, tag = 'scratch operand']
  #allocation3 [shape = 'f32[8,128]{1,0:T(8,128)}', space=vmem, size = 0x1000, scoped, tag = 'scratch operand']
  %s0 = inlined_call_operand.vmem [shape: f32[64,32], index: 0, kind: input, shape index: {}]
  %s1 = inlined_call_operand.vmem [shape: f32[32,384], index: 1, kind: input, shape index: {}]
  %s2 = inlined_call_operand.hbm [shape: f32[128,384], index: 2, kind: input, shape index: {}]
  %s3 = inlined_call_operand.vmem [shape: f32[1,384], index: 3, kind: input, shape index: {}]
  %s4 = inlined_call_operand.vmem [shape: f32[1,128], index: 4, kind: input, shape index: {}]
  %s5 = inlined_call_operand.hbm [shape: f32[8,8,128], index: 5, kind: output, shape index: {0}]
  %s6 = inlined_call_operand.hbm [shape: f32[8,128], index: 6, kind: output, shape index: {1}]
  %7 = xla_tuple %s5, %s6
  %s8 = sld [smem:[#allocation0]]
  $region50: #{tpu_custom_call.1} parent=0
    _
  %s10 = ssub.s32 1, %s8
  %s11 = scalar_select 0, %s10, %s8
  $region1: #{tpu_custom_call.1} parent=0
    #allocation4 [shape = 'u8[196608]{0}', space=vmem, size = 0x30000, scoped, tag = 'input window, operand 2, single buffered']
    #allocation5 [shape = 's32[1]{0}', space=sflag, size = 0x4, scoped, tag = 'scoped memory for tpu_custom_call.1']
    #allocation6 [shape = 's32[1]{0}', space=sflag, size = 0x4, scoped, tag = 'scoped memory for tpu_custom_call.1']
    #allocation7 [shape = 'u8[32768]{0}', space=vmem, size = 0x8000, scoped, tag = 'output window, operand 0, single buffered']
    #allocation8 [shape = 'u8[4096]{0}', space=vmem, size = 0x1000, scoped, tag = 'output window, operand 1, single buffered']
    #allocation9 [shape = 's32[1]{0}', space=sflag, size = 0x4, scoped, tag = 'scoped memory for tpu_custom_call.1']
    %12 = vsyncpa [#allocation5], 0
    %13 = vsyncpa [#allocation6], 0
    %14 = vsyncpa [#allocation9], 0
    // Predicated region
    $region2: #{tpu_custom_call.1} parent=1 // pred_check
      _
    $region3: #{tpu_custom_call.1} parent=1 // pred_check_branch
      %16 = sbr.rel (0) target = $region5
    $region4: #{tpu_custom_call.1} parent=1 // pred_region
      _
    $region5: #{tpu_custom_call.1} parent=1 // pred_fallthru
      _
    // Predicated region
    $region6: #{tpu_custom_call.1} parent=1 // pred_check
      _
    $region7: #{tpu_custom_call.1} parent=1 // pred_check_branch
      %18 = sbr.rel (0) target = $region9
    $region8: #{tpu_custom_call.1} parent=1 // pred_region
      _
    $region9: #{tpu_custom_call.1} parent=1 // pred_fallthru
      _
    // Predicated region
    $region10: #{tpu_custom_call.1} parent=1 // pred_check
      _
    $region11: #{tpu_custom_call.1} parent=1 // pred_check_branch
      %20 = sbr.rel (0) target = $region13
    $region12: #{tpu_custom_call.1} parent=1 // pred_region
      %s22 = ssub.s32 6144, 6144
      %23 = vsyncadd [#allocation5], %s22
      %s24 = sshll.u32 [#allocation4], 4
      %s25 = int_to_ptr.vmem [resolvable:$true] %s24
      %30 = dma.hbm_to_vmem [thread:$0]  %s2, 6144, %s25, [#allocation5], 384, 384, 24
    $region13: #{tpu_custom_call.1} parent=1 // pred_fallthru
      _
    // Predicated region
    $region14: #{tpu_custom_call.1} parent=1 // pred_check
      _
    $region15: #{tpu_custom_call.1} parent=1 // pred_check_branch
      %32 = sbr.rel (0) target = $region17
    $region16: #{tpu_custom_call.1} parent=1 // pred_region
      _
    $region17: #{tpu_custom_call.1} parent=1 // pred_fallthru
      _
    // Predicated region
    $region18: #{tpu_custom_call.1} parent=1 // pred_check
      _
    $region19: #{tpu_custom_call.1} parent=1 // pred_check_branch
      %34 = sbr.rel (0) target = $region21
    $region20: #{tpu_custom_call.1} parent=1 // pred_region
      _
    $region21: #{tpu_custom_call.1} parent=1 // pred_fallthru
      _
    // Predicated region
    $region22: #{tpu_custom_call.1} parent=1 // pred_check
      _
    $region23: #{tpu_custom_call.1} parent=1 // pred_check_branch
      %36 = sbr.rel (0) target = $region25
    $region24: #{tpu_custom_call.1} parent=1 // pred_region
      %37 = dma.done [#allocation5], 6144
    $region25: #{tpu_custom_call.1} parent=1 // pred_fallthru
      _
    %p38 = scmp.eq.s32.totalorder 0, 0
    // Predicated region
    $region26: #{tpu_custom_call.1} parent=1 // pred_check
      %p39 = pneg %p38
    $region27: #{tpu_custom_call.1} parent=1 // pred_check_branch
      %41 = sbr.rel (%p39) target = $region29
    $region28: #{tpu_custom_call.1} parent=1 // pred_region
      %42 = vst [vmem:[#allocation3] sm:$0xff] 0.0
    $region29: #{tpu_custom_call.1} parent=1 // pred_fallthru
      _
    %v43 = vld [vmem:[%s0] sm:$0xff]
    %v44 = vld [vmem:[%s0 + $0x8] sm:$0xff]
    %v45 = vld [vmem:[%s0 + $0x10] sm:$0xff]
    %v46 = vld [vmem:[%s0 + $0x18] sm:$0xff]
    %v47 = vld [vmem:[%s0 + $0x20] sm:$0xff]
    %v48 = vld [vmem:[%s0 + $0x28] sm:$0xff]
    %v49 = vld [vmem:[%s0 + $0x30] sm:$0xff]
    %v50 = vld [vmem:[%s0 + $0x38] sm:$0xff]
    %v51 = vld [vmem:[%s1] sm:$0xff]
    %v52 = vld [vmem:[%s1 + $0x8] sm:$0xff]
    %v53 = vld [vmem:[%s1 + $0x10] sm:$0xff]
    %v54 = vld [vmem:[%s1 + $0x18] sm:$0xff]
    %v55 = vld [vmem:[%s1 + $0x20] sm:$0xff]
    %v56 = vld [vmem:[%s1 + $0x28] sm:$0xff]
    %v57 = vld [vmem:[%s1 + $0x30] sm:$0xff]
    %v58 = vld [vmem:[%s1 + $0x38] sm:$0xff]
    %v59 = vld [vmem:[%s1 + $0x40] sm:$0xff]
    %v60 = vld [vmem:[%s1 + $0x48] sm:$0xff]
    %v61 = vld [vmem:[%s1 + $0x50] sm:$0xff]
    %v62 = vld [vmem:[%s1 + $0x58] sm:$0xff]
    %v63 = vld [vmem:[%s3] sm:$0x7]
    %v65 = vlaneseq
    %v66 = vshrl.u32 %v65, 7
    %v67 = vsub.s32 0, %v66
    %v68 = vrot.slane %v63, %v67
    %v69 = vlaneseq
    %v70 = vshrl.u32 %v69, 7
    %v71 = vsub.s32 1, %v70
    %v72 = vrot.slane %v63, %v71
    %v73 = vlaneseq
    %v74 = vshrl.u32 %v73, 7
    %v75 = vsub.s32 2, %v74
    %v76 = vrot.slane %v63, %v75
    %vm80 = vcmask 261120
    %v82 = vsel %vm80, %v43, 0
    %v85 = vsel %vm80, %v44, 0
    %v88 = vsel %vm80, %v45, 0
    %v91 = vsel %vm80, %v46, 0
    %v94 = vsel %vm80, %v47, 0
    %v97 = vsel %vm80, %v48, 0
    %v100 = vsel %vm80, %v49, 0
    %v103 = vsel %vm80, %v50, 0
    %105 = vmatprep.subr.mxu0 %v52
    %106 = vmatpush1.msra.mxu0 %v51
    %107 = vmatprep.subr.mxu0 %v55
    %108 = vmatpush1.msra.mxu0 %v54
    %109 = vmatprep.subr.mxu0 %v58
    %110 = vmatpush1.msra.mxu0 %v57
    %111 = vmatprep.subr.mxu0 %v61
    %112 = vmatpush1.msra.mxu0 %v60
    %113 = vmatprep.subr.mxu0 0.0
    %114 = vmatpush1.msra.mxu0 0.0
    %115 = vmatprep.subr.mxu0 0.0
    %116 = vmatpush1.msra.mxu0 0.0
    %117 = vmatprep.subr.mxu0 0.0
    %118 = vmatpush1.msra.mxu0 0.0
    %119 = vmatprep.subr.mxu0 0.0
    %120 = vmatpush1.msra.mxu0 0.0
    %121 = vmatprep.subr.mxu0 0.0
    %122 = vmatpush1.msra.mxu0 0.0
    %123 = vmatprep.subr.mxu0 0.0
    %124 = vmatpush1.msra.mxu0 0.0
    %125 = vmatprep.subr.mxu0 0.0
    %126 = vmatpush1.msra.mxu0 0.0
    %127 = vmatprep.subr.mxu0 0.0
    %128 = vmatpush1.msra.mxu0 0.0
    %129 = vmatprep.subr.mxu0 0.0
    %130 = vmatpush1.msra.mxu0 0.0
    %131 = vmatprep.subr.mxu0 0.0
    %132 = vmatpush1.msra.mxu0 0.0
    %133 = vmatprep.subr.mxu0 0.0
    %134 = vmatpush1.msra.mxu0 0.0
    %135 = vmatprep.subr.mxu0 0.0
    %136 = vmatpush1.msra.mxu0 0.0
    %137 = vmatprep.subr.mxu0 0.0
    %138 = vmatpush1.msra.mxu0 0.0
    %139 = vmatprep.subr.mxu0 0.0
    %140 = vmatpush1.msra.mxu0 0.0
    %141 = vmatprep.subr.mxu0 0.0
    %142 = vmatpush1.msra.mxu0 0.0
    %143 = vmatprep.subr.mxu0 0.0
    %144 = vmatpush1.msra.mxu0 0.0
    %145 = vmatprep.subr.mxu0 0.0
    %146 = vmatpush1.msra.mxu0 0.0
    %147 = vmatprep.subr.mxu0 0.0
    %148 = vmatpush1.msra.mxu0 0.0
    %149 = vmatprep.subr.mxu0 0.0
    %150 = vmatpush1.msra.mxu0 0.0
    %151 = vmatprep.subr.mxu0 0.0
    %152 = vmatpush1.msra.mxu0 0.0
    %153 = vmatprep.subr.mxu0 0.0
    %154 = vmatpush1.msra.mxu0 0.0
    %155 = vmatprep.subr.mxu0 0.0
    %156 = vmatpush1.msra.mxu0 0.0
    %157 = vmatprep.subr.mxu0 0.0
    %158 = vmatpush1.msra.mxu0 0.0
    %159 = vmatprep.subr.mxu0 0.0
    %160 = vmatpush1.msra.mxu0 0.0
    %161 = vmatprep.subr.mxu0 0.0
    %162 = vmatpush1.msra.mxu0 0.0
    %163 = vmatprep.subr.mxu0 0.0
    %164 = vmatpush1.msra.mxu0 0.0
    %165 = vmatprep.subr.mxu0 0.0
    %166 = vmatpush1.msra.mxu0 0.0
    %167 = vmatprep.subr.mxu0 0.0
    %168 = vmatpush1.msra.mxu0 0.0
    %169 = vmatprep.mubr.f32.mxu0 0.0
    %170 = vmatmul.mubr.f32.gmra.mrb[0].mxu0 %v82
    %v171 = vpop.f32.mrb[0].mxu0
    %v172 = vadd.f32 %v68, %v171
    %v173 = vpop.f32.mrb[0].mxu0
    %v174 = vadd.f32 %v72, %v173
    %175 = vmatprep.mubr.f32.mxu0 0.0
    %176 = vmatmul.mubr.f32.gmra.mrb[0].mxu0 %v85
    %v177 = vpop.f32.mrb[0].mxu0
    %v178 = vadd.f32 %v68, %v177
    %v179 = vpop.f32.mrb[0].mxu0
    %v180 = vadd.f32 %v72, %v179
    %181 = vmatprep.mubr.f32.mxu0 0.0
    %182 = vmatmul.mubr.f32.gmra.mrb[0].mxu0 %v88
    %v183 = vpop.f32.mrb[0].mxu0
    %v184 = vadd.f32 %v68, %v183
    %v185 = vpop.f32.mrb[0].mxu0
    %v186 = vadd.f32 %v72, %v185
    %187 = vmatprep.mubr.f32.mxu0 0.0
    %188 = vmatmul.mubr.f32.gmra.mrb[0].mxu0 %v91
    %v189 = vpop.f32.mrb[0].mxu0
    %v190 = vadd.f32 %v68, %v189
    %v191 = vpop.f32.mrb[0].mxu0
    %v192 = vadd.f32 %v72, %v191
    %193 = vmatprep.mubr.f32.mxu0 0.0
    %194 = vmatmul.mubr.f32.gmra.mrb[0].mxu0 %v94
    %v195 = vpop.f32.mrb[0].mxu0
    %v196 = vadd.f32 %v68, %v195
    %v197 = vpop.f32.mrb[0].mxu0
    %v198 = vadd.f32 %v72, %v197
    %199 = vmatprep.mubr.f32.mxu0 0.0
    %200 = vmatmul.mubr.f32.gmra.mrb[0].mxu0 %v97
    %v201 = vpop.f32.mrb[0].mxu0
    %v202 = vadd.f32 %v68, %v201
    %v203 = vpop.f32.mrb[0].mxu0
    %v204 = vadd.f32 %v72, %v203
    %205 = vmatprep.mubr.f32.mxu0 0.0
    %206 = vmatmul.mubr.f32.gmra.mrb[0].mxu0 %v100
    %v207 = vpop.f32.mrb[0].mxu0
    %v208 = vadd.f32 %v68, %v207
    %v209 = vpop.f32.mrb[0].mxu0
    %v210 = vadd.f32 %v72, %v209
    %211 = vmatprep.mubr.f32.mxu0 0.0
    %212 = vmatmul.mubr.f32.gmra.mrb[0].mxu0 %v103
    %v213 = vpop.f32.mrb[0].mxu0
    %v214 = vadd.f32 %v68, %v213
    %v215 = vpop.f32.mrb[0].mxu0
    %v216 = vadd.f32 %v72, %v215
    %217 = vdwg.mxu0
    %218 = vmatprep.subr.mxu0 0.0
    %219 = vmatpush1.msra.mxu0 %v53
    %220 = vmatprep.subr.mxu0 0.0
    %221 = vmatpush1.msra.mxu0 %v56
    %222 = vmatprep.subr.mxu0 0.0
    %223 = vmatpush1.msra.mxu0 %v59
    %224 = vmatprep.subr.mxu0 0.0
    %225 = vmatpush1.msra.mxu0 %v62
    %226 = vmatprep.subr.mxu0 0.0
    %227 = vmatpush1.msra.mxu0 0.0
    %228 = vmatprep.subr.mxu0 0.0
    %229 = vmatpush1.msra.mxu0 0.0
    %230 = vmatprep.subr.mxu0 0.0
    %231 = vmatpush1.msra.mxu0 0.0
    %232 = vmatprep.subr.mxu0 0.0
    %233 = vmatpush1.msra.mxu0 0.0
    %234 = vmatprep.subr.mxu0 0.0
    %235 = vmatpush1.msra.mxu0 0.0
    %236 = vmatprep.subr.mxu0 0.0
    %237 = vmatpush1.msra.mxu0 0.0
    %238 = vmatprep.subr.mxu0 0.0
    %239 = vmatpush1.msra.mxu0 0.0
    %240 = vmatprep.subr.mxu0 0.0
    %241 = vmatpush1.msra.mxu0 0.0
    %242 = vmatprep.subr.mxu0 0.0
    %243 = vmatpush1.msra.mxu0 0.0
    %244 = vmatprep.subr.mxu0 0.0
    %245 = vmatpush1.msra.mxu0 0.0
    %246 = vmatprep.subr.mxu0 0.0
    %247 = vmatpush1.msra.mxu0 0.0
    %248 = vmatprep.subr.mxu0 0.0
    %249 = vmatpush1.msra.mxu0 0.0
    %250 = vmatprep.subr.mxu0 0.0
    %251 = vmatpush1.msra.mxu0 0.0
    %252 = vmatprep.subr.mxu0 0.0
    %253 = vmatpush1.msra.mxu0 0.0
    %254 = vmatprep.subr.mxu0 0.0
    %255 = vmatpush1.msra.mxu0 0.0
    %256 = vmatprep.subr.mxu0 0.0
    %257 = vmatpush1.msra.mxu0 0.0
    %258 = vmatprep.subr.mxu0 0.0
    %259 = vmatpush1.msra.mxu0 0.0
    %260 = vmatprep.subr.mxu0 0.0
    %261 = vmatpush1.msra.mxu0 0.0
    %262 = vmatprep.subr.mxu0 0.0
    %263 = vmatpush1.msra.mxu0 0.0
    %264 = vmatprep.subr.mxu0 0.0
    %265 = vmatpush1.msra.mxu0 0.0
    %266 = vmatprep.subr.mxu0 0.0
    %267 = vmatpush1.msra.mxu0 0.0
    %268 = vmatprep.subr.mxu0 0.0
    %269 = vmatpush1.msra.mxu0 0.0
    %270 = vmatprep.subr.mxu0 0.0
    %271 = vmatpush1.msra.mxu0 0.0
    %272 = vmatprep.subr.mxu0 0.0
    %273 = vmatpush1.msra.mxu0 0.0
    %274 = vmatprep.subr.mxu0 0.0
    %275 = vmatpush1.msra.mxu0 0.0
    %276 = vmatprep.subr.mxu0 0.0
    %277 = vmatpush1.msra.mxu0 0.0
    %278 = vmatprep.subr.mxu0 0.0
    %279 = vmatpush1.msra.mxu0 0.0
    %280 = vmatprep.subr.mxu0 0.0
    %281 = vmatpush1.msra.mxu0 0.0
    %282 = vmatprep.mubr.f32.mxu0 0.0
    %283 = vmatmul.mubr.f32.gmra.mrb[0].mxu0 %v82
    %v284 = vpop.f32.mrb[0].mxu0
    %v285 = vadd.f32 %v76, %v284
    %v286 = vpop.f32.mrb[0].mxu0
    %287 = vmatprep.mubr.f32.mxu0 0.0
    %288 = vmatmul.mubr.f32.gmra.mrb[0].mxu0 %v85
    %v289 = vpop.f32.mrb[0].mxu0
    %v290 = vadd.f32 %v76, %v289
    %v291 = vpop.f32.mrb[0].mxu0
    %292 = vmatprep.mubr.f32.mxu0 0.0
    %293 = vmatmul.mubr.f32.gmra.mrb[0].mxu0 %v88
    %v294 = vpop.f32.mrb[0].mxu0
    %v295 = vadd.f32 %v76, %v294
    %v296 = vpop.f32.mrb[0].mxu0
    %297 = vmatprep.mubr.f32.mxu0 0.0
    %298 = vmatmul.mubr.f32.gmra.mrb[0].mxu0 %v91
    %v299 = vpop.f32.mrb[0].mxu0
    %v300 = vadd.f32 %v76, %v299
    %v301 = vpop.f32.mrb[0].mxu0
    %302 = vmatprep.mubr.f32.mxu0 0.0
    %303 = vmatmul.mubr.f32.gmra.mrb[0].mxu0 %v94
    %v304 = vpop.f32.mrb[0].mxu0
    %v305 = vadd.f32 %v76, %v304
    %v306 = vpop.f32.mrb[0].mxu0
    %307 = vmatprep.mubr.f32.mxu0 0.0
    %308 = vmatmul.mubr.f32.gmra.mrb[0].mxu0 %v97
    %v309 = vpop.f32.mrb[0].mxu0
    %v310 = vadd.f32 %v76, %v309
    %v311 = vpop.f32.mrb[0].mxu0
    %312 = vmatprep.mubr.f32.mxu0 0.0
    %313 = vmatmul.mubr.f32.gmra.mrb[0].mxu0 %v100
    %v314 = vpop.f32.mrb[0].mxu0
    %v315 = vadd.f32 %v76, %v314
    %v316 = vpop.f32.mrb[0].mxu0
    %317 = vmatprep.mubr.f32.mxu0 0.0
    %318 = vmatmul.mubr.f32.gmra.mrb[0].mxu0 %v103
    %v319 = vpop.f32.mrb[0].mxu0
    %v320 = vadd.f32 %v76, %v319
    %v321 = vpop.f32.mrb[0].mxu0
    %322 = vdwg.mxu0
    %323 = vst [vmem:[#allocation2] sm:$0xff] %v172
    %324 = vst [vmem:[#allocation2 + $0x8] sm:$0xff] %v174
    %325 = vst [vmem:[#allocation2 + $0x10] sm:$0xff] %v285
    %326 = vst [vmem:[#allocation2 + $0x18] sm:$0xff] %v178
    %327 = vst [vmem:[#allocation2 + $0x20] sm:$0xff] %v180
    %328 = vst [vmem:[#allocation2 + $0x28] sm:$0xff] %v290
    %329 = vst [vmem:[#allocation2 + $0x30] sm:$0xff] %v184
    %330 = vst [vmem:[#allocation2 + $0x38] sm:$0xff] %v186
    %331 = vst [vmem:[#allocation2 + $0x40] sm:$0xff] %v295
    %332 = vst [vmem:[#allocation2 + $0x48] sm:$0xff] %v190
    %333 = vst [vmem:[#allocation2 + $0x50] sm:$0xff] %v192
    %334 = vst [vmem:[#allocation2 + $0x58] sm:$0xff] %v300
    %335 = vst [vmem:[#allocation2 + $0x60] sm:$0xff] %v196
    %336 = vst [vmem:[#allocation2 + $0x68] sm:$0xff] %v198
    %337 = vst [vmem:[#allocation2 + $0x70] sm:$0xff] %v305
    %338 = vst [vmem:[#allocation2 + $0x78] sm:$0xff] %v202
    %339 = vst [vmem:[#allocation2 + $0x80] sm:$0xff] %v204
    %340 = vst [vmem:[#allocation2 + $0x88] sm:$0xff] %v310
    %341 = vst [vmem:[#allocation2 + $0x90] sm:$0xff] %v208
    %342 = vst [vmem:[#allocation2 + $0x98] sm:$0xff] %v210
    %343 = vst [vmem:[#allocation2 + $0xa0] sm:$0xff] %v315
    %344 = vst [vmem:[#allocation2 + $0xa8] sm:$0xff] %v214
    %345 = vst [vmem:[#allocation2 + $0xb0] sm:$0xff] %v216
    %346 = vst [vmem:[#allocation2 + $0xb8] sm:$0xff] %v320
    %v347 = vld [vmem:[%s4] sm:$0x1]
    %v348 = vld [vmem:[#allocation3] sm:$0xff]
    %s349 = smul.u32 0, 3
    %s350 = smul.addr %s349, 8
    %s351 = scalar_lea.vmem [#allocation2], %s350
    %v352 = vld [vmem:[%s351] sm:$0xff]
    %v353 = vld [vmem:[%s351 + $0x8] sm:$0xff]
    %v354 = vld [vmem:[%s351 + $0x10] sm:$0xff]
    %v355 = vld [vmem:[#allocation4] sm:$0xff]
    %v356 = vld [vmem:[#allocation4 + $0x8] sm:$0xff]
    %v357 = vld [vmem:[#allocation4 + $0x10] sm:$0xff]
    %v358 = vld [vmem:[#allocation4 + $0x18] sm:$0xff]
    %v359 = vld [vmem:[#allocation4 + $0x20] sm:$0xff]
    %v360 = vld [vmem:[#allocation4 + $0x28] sm:$0xff]
    %v361 = vld [vmem:[#allocation4 + $0x30] sm:$0xff]
    %v362 = vld [vmem:[#allocation4 + $0x38] sm:$0xff]
    %v363 = vld [vmem:[#allocation4 + $0x40] sm:$0xff]
    %v364 = vld [vmem:[#allocation4 + $0x48] sm:$0xff]
    %v365 = vld [vmem:[#allocation4 + $0x50] sm:$0xff]
    %v366 = vld [vmem:[#allocation4 + $0x58] sm:$0xff]
    %v367 = vld [vmem:[#allocation4 + $0x60] sm:$0xff]
    %v368 = vld [vmem:[#allocation4 + $0x68] sm:$0xff]
    %v369 = vld [vmem:[#allocation4 + $0x70] sm:$0xff]
    %v370 = vld [vmem:[#allocation4 + $0x78] sm:$0xff]
    %v371 = vld [vmem:[#allocation4 + $0x80] sm:$0xff]
    %v372 = vld [vmem:[#allocation4 + $0x88] sm:$0xff]
    %v373 = vld [vmem:[#allocation4 + $0x90] sm:$0xff]
    %v374 = vld [vmem:[#allocation4 + $0x98] sm:$0xff]
    %v375 = vld [vmem:[#allocation4 + $0xa0] sm:$0xff]
    %v376 = vld [vmem:[#allocation4 + $0xa8] sm:$0xff]
    %v377 = vld [vmem:[#allocation4 + $0xb0] sm:$0xff]
    %v378 = vld [vmem:[#allocation4 + $0xb8] sm:$0xff]
    %v379 = vld [vmem:[#allocation4 + $0xc0] sm:$0xff]
    %v380 = vld [vmem:[#allocation4 + $0xc8] sm:$0xff]
    %v381 = vld [vmem:[#allocation4 + $0xd0] sm:$0xff]
    %v382 = vld [vmem:[#allocation4 + $0xd8] sm:$0xff]
    %v383 = vld [vmem:[#allocation4 + $0xe0] sm:$0xff]
    %v384 = vld [vmem:[#allocation4 + $0xe8] sm:$0xff]
    %v385 = vld [vmem:[#allocation4 + $0xf0] sm:$0xff]
    %v386 = vld [vmem:[#allocation4 + $0xf8] sm:$0xff]
    %v387 = vld [vmem:[#allocation4 + $0x100] sm:$0xff]
    %v388 = vld [vmem:[#allocation4 + $0x108] sm:$0xff]
    %v389 = vld [vmem:[#allocation4 + $0x110] sm:$0xff]
    %v390 = vld [vmem:[#allocation4 + $0x118] sm:$0xff]
    %v391 = vld [vmem:[#allocation4 + $0x120] sm:$0xff]
    %v392 = vld [vmem:[#allocation4 + $0x128] sm:$0xff]
    %v393 = vld [vmem:[#allocation4 + $0x130] sm:$0xff]
    %v394 = vld [vmem:[#allocation4 + $0x138] sm:$0xff]
    %v395 = vld [vmem:[#allocation4 + $0x140] sm:$0xff]
    %v396 = vld [vmem:[#allocation4 + $0x148] sm:$0xff]
    %v397 = vld [vmem:[#allocation4 + $0x150] sm:$0xff]
    %v398 = vld [vmem:[#allocation4 + $0x158] sm:$0xff]
    %v399 = vld [vmem:[#allocation4 + $0x160] sm:$0xff]
    %v400 = vld [vmem:[#allocation4 + $0x168] sm:$0xff]
    %v401 = vld [vmem:[#allocation4 + $0x170] sm:$0xff]
    %v402 = vld [vmem:[#allocation4 + $0x178] sm:$0xff]
    %403 = vmatprep.subr.mxu0 %v356
    %404 = vmatpush1.msra.mxu0 %v355
    %405 = vmatprep.subr.mxu0 %v359
    %406 = vmatpush1.msra.mxu0 %v358
    %407 = vmatprep.subr.mxu0 %v362
    %408 = vmatpush1.msra.mxu0 %v361
    %409 = vmatprep.subr.mxu0 %v365
    %410 = vmatpush1.msra.mxu0 %v364
    %411 = vmatprep.subr.mxu0 %v368
    %412 = vmatpush1.msra.mxu0 %v367
    %413 = vmatprep.subr.mxu0 %v371
    %414 = vmatpush1.msra.mxu0 %v370
    %415 = vmatprep.subr.mxu0 %v374
    %416 = vmatpush1.msra.mxu0 %v373
    %417 = vmatprep.subr.mxu0 %v377
    %418 = vmatpush1.msra.mxu0 %v376
    %419 = vmatprep.subr.mxu0 %v380
    %420 = vmatpush1.msra.mxu0 %v379
    %421 = vmatprep.subr.mxu0 %v383
    %422 = vmatpush1.msra.mxu0 %v382
    %423 = vmatprep.subr.mxu0 %v386
    %424 = vmatpush1.msra.mxu0 %v385
    %425 = vmatprep.subr.mxu0 %v389
    %426 = vmatpush1.msra.mxu0 %v388
    %427 = vmatprep.subr.mxu0 %v392
    %428 = vmatpush1.msra.mxu0 %v391
    %429 = vmatprep.subr.mxu0 %v395
    %430 = vmatpush1.msra.mxu0 %v394
    %431 = vmatprep.subr.mxu0 %v398
    %432 = vmatpush1.msra.mxu0 %v397
    %433 = vmatprep.subr.mxu0 %v401
    %434 = vmatpush1.msra.mxu0 %v400
    %435 = vmatprep.subr.mxu0 0.0
    %436 = vmatpush1.msra.mxu0 0.0
    %437 = vmatprep.subr.mxu0 0.0
    %438 = vmatpush1.msra.mxu0 0.0
    %439 = vmatprep.subr.mxu0 0.0
    %440 = vmatpush1.msra.mxu0 0.0
    %441 = vmatprep.subr.mxu0 0.0
    %442 = vmatpush1.msra.mxu0 0.0
    %443 = vmatprep.subr.mxu0 0.0
    %444 = vmatpush1.msra.mxu0 0.0
    %445 = vmatprep.subr.mxu0 0.0
    %446 = vmatpush1.msra.mxu0 0.0
    %447 = vmatprep.subr.mxu0 0.0
    %448 = vmatpush1.msra.mxu0 0.0
    %449 = vmatprep.subr.mxu0 0.0
    %450 = vmatpush1.msra.mxu0 0.0
    %451 = vmatprep.subr.mxu0 0.0
    %452 = vmatpush1.msra.mxu0 0.0
    %453 = vmatprep.subr.mxu0 0.0
    %454 = vmatpush1.msra.mxu0 0.0
    %455 = vmatprep.subr.mxu0 0.0
    %456 = vmatpush1.msra.mxu0 0.0
    %457 = vmatprep.subr.mxu0 0.0
    %458 = vmatpush1.msra.mxu0 0.0
    %459 = vmatprep.subr.mxu0 0.0
    %460 = vmatpush1.msra.mxu0 0.0
    %461 = vmatprep.subr.mxu0 0.0
    %462 = vmatpush1.msra.mxu0 0.0
    %463 = vmatprep.subr.mxu0 0.0
    %464 = vmatpush1.msra.mxu0 0.0
    %465 = vmatprep.subr.mxu0 0.0
    %466 = vmatpush1.msra.mxu0 0.0
    %467 = vmatprep.mubr.f32.mxu0 0.0
    %468 = vmatmul.mubr.f32.gmra.mrb[0].mxu0 %v348
    %v469 = vpop.f32.mrb[0].mxu0
    %v470 = vadd.f32 0.0, %v469
    %v471 = vpop.f32.mrb[0].mxu0
    %v472 = vadd.f32 0.0, %v471
    %473 = vdwg.mxu0
    %474 = vmatprep.subr.mxu0 0.0
    %475 = vmatpush1.msra.mxu0 %v357
    %476 = vmatprep.subr.mxu0 0.0
    %477 = vmatpush1.msra.mxu0 %v360
    %478 = vmatprep.subr.mxu0 0.0
    %479 = vmatpush1.msra.mxu0 %v363
    %480 = vmatprep.subr.mxu0 0.0
    %481 = vmatpush1.msra.mxu0 %v366
    %482 = vmatprep.subr.mxu0 0.0
    %483 = vmatpush1.msra.mxu0 %v369
    %484 = vmatprep.subr.mxu0 0.0
    %485 = vmatpush1.msra.mxu0 %v372
    %486 = vmatprep.subr.mxu0 0.0
    %487 = vmatpush1.msra.mxu0 %v375
    %488 = vmatprep.subr.mxu0 0.0
    %489 = vmatpush1.msra.mxu0 %v378
    %490 = vmatprep.subr.mxu0 0.0
    %491 = vmatpush1.msra.mxu0 %v381
    %492 = vmatprep.subr.mxu0 0.0
    %493 = vmatpush1.msra.mxu0 %v384
    %494 = vmatprep.subr.mxu0 0.0
    %495 = vmatpush1.msra.mxu0 %v387
    %496 = vmatprep.subr.mxu0 0.0
    %497 = vmatpush1.msra.mxu0 %v390
    %498 = vmatprep.subr.mxu0 0.0
    %499 = vmatpush1.msra.mxu0 %v393
    %500 = vmatprep.subr.mxu0 0.0
    %501 = vmatpush1.msra.mxu0 %v396
    %502 = vmatprep.subr.mxu0 0.0
    %503 = vmatpush1.msra.mxu0 %v399
    %504 = vmatprep.subr.mxu0 0.0
    %505 = vmatpush1.msra.mxu0 %v402
    %506 = vmatprep.subr.mxu0 0.0
    %507 = vmatpush1.msra.mxu0 0.0
    %508 = vmatprep.subr.mxu0 0.0
    %509 = vmatpush1.msra.mxu0 0.0
    %510 = vmatprep.subr.mxu0 0.0
    %511 = vmatpush1.msra.mxu0 0.0
    %512 = vmatprep.subr.mxu0 0.0
    %513 = vmatpush1.msra.mxu0 0.0
    %514 = vmatprep.subr.mxu0 0.0
    %515 = vmatpush1.msra.mxu0 0.0
    %516 = vmatprep.subr.mxu0 0.0
    %517 = vmatpush1.msra.mxu0 0.0
    %518 = vmatprep.subr.mxu0 0.0
    %519 = vmatpush1.msra.mxu0 0.0
    %520 = vmatprep.subr.mxu0 0.0
    %521 = vmatpush1.msra.mxu0 0.0
    %522 = vmatprep.subr.mxu0 0.0
    %523 = vmatpush1.msra.mxu0 0.0
    %524 = vmatprep.subr.mxu0 0.0
    %525 = vmatpush1.msra.mxu0 0.0
    %526 = vmatprep.subr.mxu0 0.0
    %527 = vmatpush1.msra.mxu0 0.0
    %528 = vmatprep.subr.mxu0 0.0
    %529 = vmatpush1.msra.mxu0 0.0
    %530 = vmatprep.subr.mxu0 0.0
    %531 = vmatpush1.msra.mxu0 0.0
    %532 = vmatprep.subr.mxu0 0.0
    %533 = vmatpush1.msra.mxu0 0.0
    %534 = vmatprep.subr.mxu0 0.0
    %535 = vmatpush1.msra.mxu0 0.0
    %536 = vmatprep.subr.mxu0 0.0
    %537 = vmatpush1.msra.mxu0 0.0
    %538 = vmatprep.mubr.f32.mxu0 0.0
    %539 = vmatmul.mubr.f32.gmra.mrb[0].mxu0 %v348
    %v540 = vpop.f32.mrb[0].mxu0
    %v541 = vadd.f32 0.0, %v540
    %v542 = vpop.f32.mrb[0].mxu0
    %543 = vdwg.mxu0
    %v544 = vadd.f32 %v352, %v470
    %v545 = vxor.u32 %v544, 2147483648
    %v546 = vmul.f32 %v545, 1.442695
    %v547 = vpow.pop %v546
    %v548 = vadd.f32 %v547, 1.0
    %v549 = vrcp.pop %v548
    %v550 = vmul.f32 1.0, %v549
    %v551 = vadd.f32 %v353, %v472
    %v552 = vxor.u32 %v551, 2147483648
    %v553 = vmul.f32 %v552, 1.442695
    %v554 = vpow.pop %v553
    %v555 = vadd.f32 %v554, 1.0
    %v556 = vrcp.pop %v555
    %v557 = vmul.f32 1.0, %v556
    %v559 = vlaneseq
    %v560 = vshrl.u32 %v559, 7
    %v561 = vsub.s32 0, %v560
    %v562 = vrot.slane %v347, %v561
    %v564 = vadd.f32 %v541, %v562
    %v565 = vmul.f32 %v550, %v564
    %v566 = vadd.f32 %v354, %v565
    %v567 = vtanh.pop %v566
    %v568 = vsub.f32 %v348, %v567
    %v569 = vmul.f32 %v557, %v568
    %v570 = vadd.f32 %v567, %v569
    %571 = vst [vmem:[#allocation7] sm:$0xff] %v570
    %s572 = smul.u32 1, 3
    %s573 = smul.addr %s572, 8
    %s574 = scalar_lea.vmem [#allocation2], %s573
    %v575 = vld [vmem:[%s574] sm:$0xff]
    %v576 = vld [vmem:[%s574 + $0x8] sm:$0xff]
    %v577 = vld [vmem:[%s574 + $0x10] sm:$0xff]
    %v578 = vld [vmem:[#allocation4] sm:$0xff]
    %v579 = vld [vmem:[#allocation4 + $0x8] sm:$0xff]
    %v580 = vld [vmem:[#allocation4 + $0x10] sm:$0xff]
    %v581 = vld [vmem:[#allocation4 + $0x18] sm:$0xff]
    %v582 = vld [vmem:[#allocation4 + $0x20] sm:$0xff]
    %v583 = vld [vmem:[#allocation4 + $0x28] sm:$0xff]
    %v584 = vld [vmem:[#allocation4 + $0x30] sm:$0xff]
    %v585 = vld [vmem:[#allocation4 + $0x38] sm:$0xff]
    %v586 = vld [vmem:[#allocation4 + $0x40] sm:$0xff]
    %v587 = vld [vmem:[#allocation4 + $0x48] sm:$0xff]
    %v588 = vld [vmem:[#allocation4 + $0x50] sm:$0xff]
    %v589 = vld [vmem:[#allocation4 + $0x58] sm:$0xff]
    %v590 = vld [vmem:[#allocation4 + $0x60] sm:$0xff]
    %v591 = vld [vmem:[#allocation4 + $0x68] sm:$0xff]
    %v592 = vld [vmem:[#allocation4 + $0x70] sm:$0xff]
    %v593 = vld [vmem:[#allocation4 + $0x78] sm:$0xff]
    %v594 = vld [vmem:[#allocation4 + $0x80] sm:$0xff]
    %v595 = vld [vmem:[#allocation4 + $0x88] sm:$0xff]
    %v596 = vld [vmem:[#allocation4 + $0x90] sm:$0xff]
    %v597 = vld [vmem:[#allocation4 + $0x98] sm:$0xff]
    %v598 = vld [vmem:[#allocation4 + $0xa0] sm:$0xff]
    %v599 = vld [vmem:[#allocation4 + $0xa8] sm:$0xff]
    %v600 = vld [vmem:[#allocation4 + $0xb0] sm:$0xff]
    %v601 = vld [vmem:[#allocation4 + $0xb8] sm:$0xff]
    %v602 = vld [vmem:[#allocation4 + $0xc0] sm:$0xff]
    %v603 = vld [vmem:[#allocation4 + $0xc8] sm:$0xff]
    %v604 = vld [vmem:[#allocation4 + $0xd0] sm:$0xff]
    %v605 = vld [vmem:[#allocation4 + $0xd8] sm:$0xff]
    %v606 = vld [vmem:[#allocation4 + $0xe0] sm:$0xff]
    %v607 = vld [vmem:[#allocation4 + $0xe8] sm:$0xff]
    %v608 = vld [vmem:[#allocation4 + $0xf0] sm:$0xff]
    %v609 = vld [vmem:[#allocation4 + $0xf8] sm:$0xff]
    %v610 = vld [vmem:[#allocation4 + $0x100] sm:$0xff]
    %v611 = vld [vmem:[#allocation4 + $0x108] sm:$0xff]
    %v612 = vld [vmem:[#allocation4 + $0x110] sm:$0xff]
    %v613 = vld [vmem:[#allocation4 + $0x118] sm:$0xff]
    %v614 = vld [vmem:[#allocation4 + $0x120] sm:$0xff]
    %v615 = vld [vmem:[#allocation4 + $0x128] sm:$0xff]
    %v616 = vld [vmem:[#allocation4 + $0x130] sm:$0xff]
    %v617 = vld [vmem:[#allocation4 + $0x138] sm:$0xff]
    %v618 = vld [vmem:[#allocation4 + $0x140] sm:$0xff]
    %v619 = vld [vmem:[#allocation4 + $0x148] sm:$0xff]
    %v620 = vld [vmem:[#allocation4 + $0x150] sm:$0xff]
    %v621 = vld [vmem:[#allocation4 + $0x158] sm:$0xff]
    %v622 = vld [vmem:[#allocation4 + $0x160] sm:$0xff]
    %v623 = vld [vmem:[#allocation4 + $0x168] sm:$0xff]
    %v624 = vld [vmem:[#allocation4 + $0x170] sm:$0xff]
    %v625 = vld [vmem:[#allocation4 + $0x178] sm:$0xff]
    %626 = vmatprep.subr.mxu0 %v579
    %627 = vmatpush1.msra.mxu0 %v578
    %628 = vmatprep.subr.mxu0 %v582
    %629 = vmatpush1.msra.mxu0 %v581
    %630 = vmatprep.subr.mxu0 %v585
    %631 = vmatpush1.msra.mxu0 %v584
    %632 = vmatprep.subr.mxu0 %v588
    %633 = vmatpush1.msra.mxu0 %v587
    %634 = vmatprep.subr.mxu0 %v591
    %635 = vmatpush1.msra.mxu0 %v590
    %636 = vmatprep.subr.mxu0 %v594
    %637 = vmatpush1.msra.mxu0 %v593
    %638 = vmatprep.subr.mxu0 %v597
    %639 = vmatpush1.msra.mxu0 %v596
    %640 = vmatprep.subr.mxu0 %v600
    %641 = vmatpush1.msra.mxu0 %v599
    %642 = vmatprep.subr.mxu0 %v603
    %643 = vmatpush1.msra.mxu0 %v602
    %644 = vmatprep.subr.mxu0 %v606
    %645 = vmatpush1.msra.mxu0 %v605
    %646 = vmatprep.subr.mxu0 %v609
    %647 = vmatpush1.msra.mxu0 %v608
    %648 = vmatprep.subr.mxu0 %v612
    %649 = vmatpush1.msra.mxu0 %v611
    %650 = vmatprep.subr.mxu0 %v615
    %651 = vmatpush1.msra.mxu0 %v614
    %652 = vmatprep.subr.mxu0 %v618
    %653 = vmatpush1.msra.mxu0 %v617
    %654 = vmatprep.subr.mxu0 %v621
    %655 = vmatpush1.msra.mxu0 %v620
    %656 = vmatprep.subr.mxu0 %v624
    %657 = vmatpush1.msra.mxu0 %v623
    %658 = vmatprep.subr.mxu0 0.0
    %659 = vmatpush1.msra.mxu0 0.0
    %660 = vmatprep.subr.mxu0 0.0
    %661 = vmatpush1.msra.mxu0 0.0
    %662 = vmatprep.subr.mxu0 0.0
    %663 = vmatpush1.msra.mxu0 0.0
    %664 = vmatprep.subr.mxu0 0.0
    %665 = vmatpush1.msra.mxu0 0.0
    %666 = vmatprep.subr.mxu0 0.0
    %667 = vmatpush1.msra.mxu0 0.0
    %668 = vmatprep.subr.mxu0 0.0
    %669 = vmatpush1.msra.mxu0 0.0
    %670 = vmatprep.subr.mxu0 0.0
    %671 = vmatpush1.msra.mxu0 0.0
    %672 = vmatprep.subr.mxu0 0.0
    %673 = vmatpush1.msra.mxu0 0.0
    %674 = vmatprep.subr.mxu0 0.0
    %675 = vmatpush1.msra.mxu0 0.0
    %676 = vmatprep.subr.mxu0 0.0
    %677 = vmatpush1.msra.mxu0 0.0
    %678 = vmatprep.subr.mxu0 0.0
    %679 = vmatpush1.msra.mxu0 0.0
    %680 = vmatprep.subr.mxu0 0.0
    %681 = vmatpush1.msra.mxu0 0.0
    %682 = vmatprep.subr.mxu0 0.0
    %683 = vmatpush1.msra.mxu0 0.0
    %684 = vmatprep.subr.mxu0 0.0
    %685 = vmatpush1.msra.mxu0 0.0
    %686 = vmatprep.subr.mxu0 0.0
    %687 = vmatpush1.msra.mxu0 0.0
    %688 = vmatprep.subr.mxu0 0.0
    %689 = vmatpush1.msra.mxu0 0.0
    %690 = vmatprep.mubr.f32.mxu0 0.0
    %691 = vmatmul.mubr.f32.gmra.mrb[0].mxu0 %v570
    %v692 = vpop.f32.mrb[0].mxu0
    %v693 = vadd.f32 0.0, %v692
    %v694 = vpop.f32.mrb[0].mxu0
    %v695 = vadd.f32 0.0, %v694
    %696 = vdwg.mxu0
    %697 = vmatprep.subr.mxu0 0.0
    %698 = vmatpush1.msra.mxu0 %v580
    %699 = vmatprep.subr.mxu0 0.0
    %700 = vmatpush1.msra.mxu0 %v583
    %701 = vmatprep.subr.mxu0 0.0
    %702 = vmatpush1.msra.mxu0 %v586
    %703 = vmatprep.subr.mxu0 0.0
    %704 = vmatpush1.msra.mxu0 %v589
    %705 = vmatprep.subr.mxu0 0.0
    %706 = vmatpush1.msra.mxu0 %v592
    %707 = vmatprep.subr.mxu0 0.0
    %708 = vmatpush1.msra.mxu0 %v595
    %709 = vmatprep.subr.mxu0 0.0
    %710 = vmatpush1.msra.mxu0 %v598
    %711 = vmatprep.subr.mxu0 0.0
    %712 = vmatpush1.msra.mxu0 %v601
    %713 = vmatprep.subr.mxu0 0.0
    %714 = vmatpush1.msra.mxu0 %v604
    %715 = vmatprep.subr.mxu0 0.0
    %716 = vmatpush1.msra.mxu0 %v607
    %717 = vmatprep.subr.mxu0 0.0
    %718 = vmatpush1.msra.mxu0 %v610
    %719 = vmatprep.subr.mxu0 0.0
    %720 = vmatpush1.msra.mxu0 %v613
    %721 = vmatprep.subr.mxu0 0.0
    %722 = vmatpush1.msra.mxu0 %v616
    %723 = vmatprep.subr.mxu0 0.0
    %724 = vmatpush1.msra.mxu0 %v619
    %725 = vmatprep.subr.mxu0 0.0
    %726 = vmatpush1.msra.mxu0 %v622
    %727 = vmatprep.subr.mxu0 0.0
    %728 = vmatpush1.msra.mxu0 %v625
    %729 = vmatprep.subr.mxu0 0.0
    %730 = vmatpush1.msra.mxu0 0.0
    %731 = vmatprep.subr.mxu0 0.0
    %732 = vmatpush1.msra.mxu0 0.0
    %733 = vmatprep.subr.mxu0 0.0
    %734 = vmatpush1.msra.mxu0 0.0
    %735 = vmatprep.subr.mxu0 0.0
    %736 = vmatpush1.msra.mxu0 0.0
    %737 = vmatprep.subr.mxu0 0.0
    %738 = vmatpush1.msra.mxu0 0.0
    %739 = vmatprep.subr.mxu0 0.0
    %740 = vmatpush1.msra.mxu0 0.0
    %741 = vmatprep.subr.mxu0 0.0
    %742 = vmatpush1.msra.mxu0 0.0
    %743 = vmatprep.subr.mxu0 0.0
    %744 = vmatpush1.msra.mxu0 0.0
    %745 = vmatprep.subr.mxu0 0.0
    %746 = vmatpush1.msra.mxu0 0.0
    %747 = vmatprep.subr.mxu0 0.0
    %748 = vmatpush1.msra.mxu0 0.0
    %749 = vmatprep.subr.mxu0 0.0
    %750 = vmatpush1.msra.mxu0 0.0
    %751 = vmatprep.subr.mxu0 0.0
    %752 = vmatpush1.msra.mxu0 0.0
    %753 = vmatprep.subr.mxu0 0.0
    %754 = vmatpush1.msra.mxu0 0.0
    %755 = vmatprep.subr.mxu0 0.0
    %756 = vmatpush1.msra.mxu0 0.0
    %757 = vmatprep.subr.mxu0 0.0
    %758 = vmatpush1.msra.mxu0 0.0
    %759 = vmatprep.subr.mxu0 0.0
    %760 = vmatpush1.msra.mxu0 0.0
    %761 = vmatprep.mubr.f32.mxu0 0.0
    %762 = vmatmul.mubr.f32.gmra.mrb[0].mxu0 %v570
    %v763 = vpop.f32.mrb[0].mxu0
    %v764 = vadd.f32 0.0, %v763
    %v765 = vpop.f32.mrb[0].mxu0
    %766 = vdwg.mxu0
    %v767 = vadd.f32 %v575, %v693
    %v768 = vxor.u32 %v767, 2147483648
    %v769 = vmul.f32 %v768, 1.442695
    %v770 = vpow.pop %v769
    %v771 = vadd.f32 %v770, 1.0
    %v772 = vrcp.pop %v771
    %v773 = vmul.f32 1.0, %v772
    %v774 = vadd.f32 %v576, %v695
    %v775 = vxor.u32 %v774, 2147483648
    %v776 = vmul.f32 %v775, 1.442695
    %v777 = vpow.pop %v776
    %v778 = vadd.f32 %v777, 1.0
    %v779 = vrcp.pop %v778
    %v780 = vmul.f32 1.0, %v779
    %v781 = vadd.f32 %v764, %v562
    %v782 = vmul.f32 %v773, %v781
    %v783 = vadd.f32 %v577, %v782
    %v784 = vtanh.pop %v783
    %v785 = vsub.f32 %v570, %v784
    %v786 = vmul.f32 %v780, %v785
    %v787 = vadd.f32 %v784, %v786
    %s788 = scalar_lea.vmem [#allocation7], 8
    %789 = vst [vmem:[%s788] sm:$0xff] %v787
    %s790 = smul.u32 2, 3
    %s791 = smul.addr %s790, 8
    %s792 = scalar_lea.vmem [#allocation2], %s791
    %v793 = vld [vmem:[%s792] sm:$0xff]
    %v794 = vld [vmem:[%s792 + $0x8] sm:$0xff]
    %v795 = vld [vmem:[%s792 + $0x10] sm:$0xff]
    %v796 = vld [vmem:[#allocation4] sm:$0xff]
    %v797 = vld [vmem:[#allocation4 + $0x8] sm:$0xff]
    %v798 = vld [vmem:[#allocation4 + $0x10] sm:$0xff]
    %v799 = vld [vmem:[#allocation4 + $0x18] sm:$0xff]
    %v800 = vld [vmem:[#allocation4 + $0x20] sm:$0xff]
    %v801 = vld [vmem:[#allocation4 + $0x28] sm:$0xff]
    %v802 = vld [vmem:[#allocation4 + $0x30] sm:$0xff]
    %v803 = vld [vmem:[#allocation4 + $0x38] sm:$0xff]
    %v804 = vld [vmem:[#allocation4 + $0x40] sm:$0xff]
    %v805 = vld [vmem:[#allocation4 + $0x48] sm:$0xff]
    %v806 = vld [vmem:[#allocation4 + $0x50] sm:$0xff]
    %v807 = vld [vmem:[#allocation4 + $0x58] sm:$0xff]
    %v808 = vld [vmem:[#allocation4 + $0x60] sm:$0xff]
    %v809 = vld [vmem:[#allocation4 + $0x68] sm:$0xff]
    %v810 = vld [vmem:[#allocation4 + $0x70] sm:$0xff]
    %v811 = vld [vmem:[#allocation4 + $0x78] sm:$0xff]
    %v812 = vld [vmem:[#allocation4 + $0x80] sm:$0xff]
    %v813 = vld [vmem:[#allocation4 + $0x88] sm:$0xff]
    %v814 = vld [vmem:[#allocation4 + $0x90] sm:$0xff]
    %v815 = vld [vmem:[#allocation4 + $0x98] sm:$0xff]
    %v816 = vld [vmem:[#allocation4 + $0xa0] sm:$0xff]
    %v817 = vld [vmem:[#allocation4 + $0xa8] sm:$0xff]
    %v818 = vld [vmem:[#allocation4 + $0xb0] sm:$0xff]
    %v819 = vld [vmem:[#allocation4 + $0xb8] sm:$0xff]
    %v820 = vld [vmem:[#allocation4 + $0xc0] sm:$0xff]
    %v821 = vld [vmem:[#allocation4 + $0xc8] sm:$0xff]
    %v822 = vld [vmem:[#allocation4 + $0xd0] sm:$0xff]
    %v823 = vld [vmem:[#allocation4 + $0xd8] sm:$0xff]
    %v824 = vld [vmem:[#allocation4 + $0xe0] sm:$0xff]
    %v825 = vld [vmem:[#allocation4 + $0xe8] sm:$0xff]
    %v826 = vld [vmem:[#allocation4 + $0xf0] sm:$0xff]
    %v827 = vld [vmem:[#allocation4 + $0xf8] sm:$0xff]
    %v828 = vld [vmem:[#allocation4 + $0x100] sm:$0xff]
    %v829 = vld [vmem:[#allocation4 + $0x108] sm:$0xff]
    %v830 = vld [vmem:[#allocation4 + $0x110] sm:$0xff]
    %v831 = vld [vmem:[#allocation4 + $0x118] sm:$0xff]
    %v832 = vld [vmem:[#allocation4 + $0x120] sm:$0xff]
    %v833 = vld [vmem:[#allocation4 + $0x128] sm:$0xff]
    %v834 = vld [vmem:[#allocation4 + $0x130] sm:$0xff]
    %v835 = vld [vmem:[#allocation4 + $0x138] sm:$0xff]
    %v836 = vld [vmem:[#allocation4 + $0x140] sm:$0xff]
    %v837 = vld [vmem:[#allocation4 + $0x148] sm:$0xff]
    %v838 = vld [vmem:[#allocation4 + $0x150] sm:$0xff]
    %v839 = vld [vmem:[#allocation4 + $0x158] sm:$0xff]
    %v840 = vld [vmem:[#allocation4 + $0x160] sm:$0xff]
    %v841 = vld [vmem:[#allocation4 + $0x168] sm:$0xff]
    %v842 = vld [vmem:[#allocation4 + $0x170] sm:$0xff]
    %v843 = vld [vmem:[#allocation4 + $0x178] sm:$0xff]
    %844 = vmatprep.subr.mxu0 %v797
    %845 = vmatpush1.msra.mxu0 %v796
    %846 = vmatprep.subr.mxu0 %v800
    %847 = vmatpush1.msra.mxu0 %v799
    %848 = vmatprep.subr.mxu0 %v803
    %849 = vmatpush1.msra.mxu0 %v802
    %850 = vmatprep.subr.mxu0 %v806
    %851 = vmatpush1.msra.mxu0 %v805
    %852 = vmatprep.subr.mxu0 %v809
    %853 = vmatpush1.msra.mxu0 %v808
    %854 = vmatprep.subr.mxu0 %v812
    %855 = vmatpush1.msra.mxu0 %v811
    %856 = vmatprep.subr.mxu0 %v815
    %857 = vmatpush1.msra.mxu0 %v814
    %858 = vmatprep.subr.mxu0 %v818
    %859 = vmatpush1.msra.mxu0 %v817
    %860 = vmatprep.subr.mxu0 %v821
    %861 = vmatpush1.msra.mxu0 %v820
    %862 = vmatprep.subr.mxu0 %v824
    %863 = vmatpush1.msra.mxu0 %v823
    %864 = vmatprep.subr.mxu0 %v827
    %865 = vmatpush1.msra.mxu0 %v826
    %866 = vmatprep.subr.mxu0 %v830
    %867 = vmatpush1.msra.mxu0 %v829
    %868 = vmatprep.subr.mxu0 %v833
    %869 = vmatpush1.msra.mxu0 %v832
    %870 = vmatprep.subr.mxu0 %v836
    %871 = vmatpush1.msra.mxu0 %v835
    %872 = vmatprep.subr.mxu0 %v839
    %873 = vmatpush1.msra.mxu0 %v838
    %874 = vmatprep.subr.mxu0 %v842
    %875 = vmatpush1.msra.mxu0 %v841
    %876 = vmatprep.subr.mxu0 0.0
    %877 = vmatpush1.msra.mxu0 0.0
    %878 = vmatprep.subr.mxu0 0.0
    %879 = vmatpush1.msra.mxu0 0.0
    %880 = vmatprep.subr.mxu0 0.0
    %881 = vmatpush1.msra.mxu0 0.0
    %882 = vmatprep.subr.mxu0 0.0
    %883 = vmatpush1.msra.mxu0 0.0
    %884 = vmatprep.subr.mxu0 0.0
    %885 = vmatpush1.msra.mxu0 0.0
    %886 = vmatprep.subr.mxu0 0.0
    %887 = vmatpush1.msra.mxu0 0.0
    %888 = vmatprep.subr.mxu0 0.0
    %889 = vmatpush1.msra.mxu0 0.0
    %890 = vmatprep.subr.mxu0 0.0
    %891 = vmatpush1.msra.mxu0 0.0
    %892 = vmatprep.subr.mxu0 0.0
    %893 = vmatpush1.msra.mxu0 0.0
    %894 = vmatprep.subr.mxu0 0.0
    %895 = vmatpush1.msra.mxu0 0.0
    %896 = vmatprep.subr.mxu0 0.0
    %897 = vmatpush1.msra.mxu0 0.0
    %898 = vmatprep.subr.mxu0 0.0
    %899 = vmatpush1.msra.mxu0 0.0
    %900 = vmatprep.subr.mxu0 0.0
    %901 = vmatpush1.msra.mxu0 0.0
    %902 = vmatprep.subr.mxu0 0.0
    %903 = vmatpush1.msra.mxu0 0.0
    %904 = vmatprep.subr.mxu0 0.0
    %905 = vmatpush1.msra.mxu0 0.0
    %906 = vmatprep.subr.mxu0 0.0
    %907 = vmatpush1.msra.mxu0 0.0
    %908 = vmatprep.mubr.f32.mxu0 0.0
    %909 = vmatmul.mubr.f32.gmra.mrb[0].mxu0 %v787
    %v910 = vpop.f32.mrb[0].mxu0
    %v911 = vadd.f32 0.0, %v910
    %v912 = vpop.f32.mrb[0].mxu0
    %v913 = vadd.f32 0.0, %v912
    %914 = vdwg.mxu0
    %915 = vmatprep.subr.mxu0 0.0
    %916 = vmatpush1.msra.mxu0 %v798
    %917 = vmatprep.subr.mxu0 0.0
    %918 = vmatpush1.msra.mxu0 %v801
    %919 = vmatprep.subr.mxu0 0.0
    %920 = vmatpush1.msra.mxu0 %v804
    %921 = vmatprep.subr.mxu0 0.0
    %922 = vmatpush1.msra.mxu0 %v807
    %923 = vmatprep.subr.mxu0 0.0
    %924 = vmatpush1.msra.mxu0 %v810
    %925 = vmatprep.subr.mxu0 0.0
    %926 = vmatpush1.msra.mxu0 %v813
    %927 = vmatprep.subr.mxu0 0.0
    %928 = vmatpush1.msra.mxu0 %v816
    %929 = vmatprep.subr.mxu0 0.0
    %930 = vmatpush1.msra.mxu0 %v819
    %931 = vmatprep.subr.mxu0 0.0
    %932 = vmatpush1.msra.mxu0 %v822
    %933 = vmatprep.subr.mxu0 0.0
    %934 = vmatpush1.msra.mxu0 %v825
    %935 = vmatprep.subr.mxu0 0.0
    %936 = vmatpush1.msra.mxu0 %v828
    %937 = vmatprep.subr.mxu0 0.0
    %938 = vmatpush1.msra.mxu0 %v831
    %939 = vmatprep.subr.mxu0 0.0
    %940 = vmatpush1.msra.mxu0 %v834
    %941 = vmatprep.subr.mxu0 0.0
    %942 = vmatpush1.msra.mxu0 %v837
    %943 = vmatprep.subr.mxu0 0.0
    %944 = vmatpush1.msra.mxu0 %v840
    %945 = vmatprep.subr.mxu0 0.0
    %946 = vmatpush1.msra.mxu0 %v843
    %947 = vmatprep.subr.mxu0 0.0
    %948 = vmatpush1.msra.mxu0 0.0
    %949 = vmatprep.subr.mxu0 0.0
    %950 = vmatpush1.msra.mxu0 0.0
    %951 = vmatprep.subr.mxu0 0.0
    %952 = vmatpush1.msra.mxu0 0.0
    %953 = vmatprep.subr.mxu0 0.0
    %954 = vmatpush1.msra.mxu0 0.0
    %955 = vmatprep.subr.mxu0 0.0
    %956 = vmatpush1.msra.mxu0 0.0
    %957 = vmatprep.subr.mxu0 0.0
    %958 = vmatpush1.msra.mxu0 0.0
    %959 = vmatprep.subr.mxu0 0.0
    %960 = vmatpush1.msra.mxu0 0.0
    %961 = vmatprep.subr.mxu0 0.0
    %962 = vmatpush1.msra.mxu0 0.0
    %963 = vmatprep.subr.mxu0 0.0
    %964 = vmatpush1.msra.mxu0 0.0
    %965 = vmatprep.subr.mxu0 0.0
    %966 = vmatpush1.msra.mxu0 0.0
    %967 = vmatprep.subr.mxu0 0.0
    %968 = vmatpush1.msra.mxu0 0.0
    %969 = vmatprep.subr.mxu0 0.0
    %970 = vmatpush1.msra.mxu0 0.0
    %971 = vmatprep.subr.mxu0 0.0
    %972 = vmatpush1.msra.mxu0 0.0
    %973 = vmatprep.subr.mxu0 0.0
    %974 = vmatpush1.msra.mxu0 0.0
    %975 = vmatprep.subr.mxu0 0.0
    %976 = vmatpush1.msra.mxu0 0.0
    %977 = vmatprep.subr.mxu0 0.0
    %978 = vmatpush1.msra.mxu0 0.0
    %979 = vmatprep.mubr.f32.mxu0 0.0
    %980 = vmatmul.mubr.f32.gmra.mrb[0].mxu0 %v787
    %v981 = vpop.f32.mrb[0].mxu0
    %v982 = vadd.f32 0.0, %v981
    %v983 = vpop.f32.mrb[0].mxu0
    %984 = vdwg.mxu0
    %v985 = vadd.f32 %v793, %v911
    %v986 = vxor.u32 %v985, 2147483648
    %v987 = vmul.f32 %v986, 1.442695
    %v988 = vpow.pop %v987
    %v989 = vadd.f32 %v988, 1.0
    %v990 = vrcp.pop %v989
    %v991 = vmul.f32 1.0, %v990
    %v992 = vadd.f32 %v794, %v913
    %v993 = vxor.u32 %v992, 2147483648
    %v994 = vmul.f32 %v993, 1.442695
    %v995 = vpow.pop %v994
    %v996 = vadd.f32 %v995, 1.0
    %v997 = vrcp.pop %v996
    %v998 = vmul.f32 1.0, %v997
    %v999 = vadd.f32 %v982, %v562
    %v1000 = vmul.f32 %v991, %v999
    %v1001 = vadd.f32 %v795, %v1000
    %v1002 = vtanh.pop %v1001
    %v1003 = vsub.f32 %v787, %v1002
    %v1004 = vmul.f32 %v998, %v1003
    %v1005 = vadd.f32 %v1002, %v1004
    %s1006 = scalar_lea.vmem [#allocation7], 16
    %1007 = vst [vmem:[%s1006] sm:$0xff] %v1005
    %s1008 = smul.u32 3, 3
    %s1009 = smul.addr %s1008, 8
    %s1010 = scalar_lea.vmem [#allocation2], %s1009
    %v1011 = vld [vmem:[%s1010] sm:$0xff]
    %v1012 = vld [vmem:[%s1010 + $0x8] sm:$0xff]
    %v1013 = vld [vmem:[%s1010 + $0x10] sm:$0xff]
    %v1014 = vld [vmem:[#allocation4] sm:$0xff]
    %v1015 = vld [vmem:[#allocation4 + $0x8] sm:$0xff]
    %v1016 = vld [vmem:[#allocation4 + $0x10] sm:$0xff]
    %v1017 = vld [vmem:[#allocation4 + $0x18] sm:$0xff]
    %v1018 = vld [vmem:[#allocation4 + $0x20] sm:$0xff]
    %v1019 = vld [vmem:[#allocation4 + $0x28] sm:$0xff]
    %v1020 = vld [vmem:[#allocation4 + $0x30] sm:$0xff]
    %v1021 = vld [vmem:[#allocation4 + $0x38] sm:$0xff]
    %v1022 = vld [vmem:[#allocation4 + $0x40] sm:$0xff]
    %v1023 = vld [vmem:[#allocation4 + $0x48] sm:$0xff]
    %v1024 = vld [vmem:[#allocation4 + $0x50] sm:$0xff]
    %v1025 = vld [vmem:[#allocation4 + $0x58] sm:$0xff]
    %v1026 = vld [vmem:[#allocation4 + $0x60] sm:$0xff]
    %v1027 = vld [vmem:[#allocation4 + $0x68] sm:$0xff]
    %v1028 = vld [vmem:[#allocation4 + $0x70] sm:$0xff]
    %v1029 = vld [vmem:[#allocation4 + $0x78] sm:$0xff]
    %v1030 = vld [vmem:[#allocation4 + $0x80] sm:$0xff]
    %v1031 = vld [vmem:[#allocation4 + $0x88] sm:$0xff]
    %v1032 = vld [vmem:[#allocation4 + $0x90] sm:$0xff]
    %v1033 = vld [vmem:[#allocation4 + $0x98] sm:$0xff]
    %v1034 = vld [vmem:[#allocation4 + $0xa0] sm:$0xff]
    %v1035 = vld [vmem:[#allocation4 + $0xa8] sm:$0xff]
    %v1036 = vld [vmem:[#allocation4 + $0xb0] sm:$0xff]
    %v1037 = vld [vmem:[#allocation4 + $0xb8] sm:$0xff]
    %v1038 = vld [vmem:[#allocation4 + $0xc0] sm:$0xff]
    %v1039 = vld [vmem:[#allocation4 + $0xc8] sm:$0xff]
    %v1040 = vld [vmem:[#allocation4 + $0xd0] sm:$0xff]
    %v1041 = vld [vmem:[#allocation4 + $0xd8] sm:$0xff]
    %v1042 = vld [vmem:[#allocation4 + $0xe0] sm:$0xff]
    %v1043 = vld [vmem:[#allocation4 + $0xe8] sm:$0xff]
    %v1044 = vld [vmem:[#allocation4 + $0xf0] sm:$0xff]
    %v1045 = vld [vmem:[#allocation4 + $0xf8] sm:$0xff]
    %v1046 = vld [vmem:[#allocation4 + $0x100] sm:$0xff]
    %v1047 = vld [vmem:[#allocation4 + $0x108] sm:$0xff]
    %v1048 = vld [vmem:[#allocation4 + $0x110] sm:$0xff]
    %v1049 = vld [vmem:[#allocation4 + $0x118] sm:$0xff]
    %v1050 = vld [vmem:[#allocation4 + $0x120] sm:$0xff]
    %v1051 = vld [vmem:[#allocation4 + $0x128] sm:$0xff]
    %v1052 = vld [vmem:[#allocation4 + $0x130] sm:$0xff]
    %v1053 = vld [vmem:[#allocation4 + $0x138] sm:$0xff]
    %v1054 = vld [vmem:[#allocation4 + $0x140] sm:$0xff]
    %v1055 = vld [vmem:[#allocation4 + $0x148] sm:$0xff]
    %v1056 = vld [vmem:[#allocation4 + $0x150] sm:$0xff]
    %v1057 = vld [vmem:[#allocation4 + $0x158] sm:$0xff]
    %v1058 = vld [vmem:[#allocation4 + $0x160] sm:$0xff]
    %v1059 = vld [vmem:[#allocation4 + $0x168] sm:$0xff]
    %v1060 = vld [vmem:[#allocation4 + $0x170] sm:$0xff]
    %v1061 = vld [vmem:[#allocation4 + $0x178] sm:$0xff]
    %1062 = vmatprep.subr.mxu0 %v1015
    %1063 = vmatpush1.msra.mxu0 %v1014
    %1064 = vmatprep.subr.mxu0 %v1018
    %1065 = vmatpush1.msra.mxu0 %v1017
    %1066 = vmatprep.subr.mxu0 %v1021
    %1067 = vmatpush1.msra.mxu0 %v1020
    %1068 = vmatprep.subr.mxu0 %v1024
    %1069 = vmatpush1.msra.mxu0 %v1023
    %1070 = vmatprep.subr.mxu0 %v1027
    %1071 = vmatpush1.msra.mxu0 %v1026
    %1072 = vmatprep.subr.mxu0 %v1030
    %1073 = vmatpush1.msra.mxu0 %v1029
    %1074 = vmatprep.subr.mxu0 %v1033
    %1075 = vmatpush1.msra.mxu0 %v1032
    %1076 = vmatprep.subr.mxu0 %v1036
    %1077 = vmatpush1.msra.mxu0 %v1035
    %1078 = vmatprep.subr.mxu0 %v1039
    %1079 = vmatpush1.msra.mxu0 %v1038
    %1080 = vmatprep.subr.mxu0 %v1042
    %1081 = vmatpush1.msra.mxu0 %v1041
    %1082 = vmatprep.subr.mxu0 %v1045
    %1083 = vmatpush1.msra.mxu0 %v1044
    %1084 = vmatprep.subr.mxu0 %v1048
    %1085 = vmatpush1.msra.mxu0 %v1047
    %1086 = vmatprep.subr.mxu0 %v1051
    %1087 = vmatpush1.msra.mxu0 %v1050
    %1088 = vmatprep.subr.mxu0 %v1054
    %1089 = vmatpush1.msra.mxu0 %v1053
    %1090 = vmatprep.subr.mxu0 %v1057
    %1091 = vmatpush1.msra.mxu0 %v1056
    %1092 = vmatprep.subr.mxu0 %v1060
    %1093 = vmatpush1.msra.mxu0 %v1059
    %1094 = vmatprep.subr.mxu0 0.0
    %1095 = vmatpush1.msra.mxu0 0.0
    %1096 = vmatprep.subr.mxu0 0.0
    %1097 = vmatpush1.msra.mxu0 0.0
    %1098 = vmatprep.subr.mxu0 0.0
    %1099 = vmatpush1.msra.mxu0 0.0
    %1100 = vmatprep.subr.mxu0 0.0
    %1101 = vmatpush1.msra.mxu0 0.0
    %1102 = vmatprep.subr.mxu0 0.0
    %1103 = vmatpush1.msra.mxu0 0.0
    %1104 = vmatprep.subr.mxu0 0.0
    %1105 = vmatpush1.msra.mxu0 0.0
    %1106 = vmatprep.subr.mxu0 0.0
    %1107 = vmatpush1.msra.mxu0 0.0
    %1108 = vmatprep.subr.mxu0 0.0
    %1109 = vmatpush1.msra.mxu0 0.0
    %1110 = vmatprep.subr.mxu0 0.0
    %1111 = vmatpush1.msra.mxu0 0.0
    %1112 = vmatprep.subr.mxu0 0.0
    %1113 = vmatpush1.msra.mxu0 0.0
    %1114 = vmatprep.subr.mxu0 0.0
    %1115 = vmatpush1.msra.mxu0 0.0
    %1116 = vmatprep.subr.mxu0 0.0
    %1117 = vmatpush1.msra.mxu0 0.0
    %1118 = vmatprep.subr.mxu0 0.0
    %1119 = vmatpush1.msra.mxu0 0.0
    %1120 = vmatprep.subr.mxu0 0.0
    %1121 = vmatpush1.msra.mxu0 0.0
    %1122 = vmatprep.subr.mxu0 0.0
    %1123 = vmatpush1.msra.mxu0 0.0
    %1124 = vmatprep.subr.mxu0 0.0
    %1125 = vmatpush1.msra.mxu0 0.0
    %1126 = vmatprep.mubr.f32.mxu0 0.0
    %1127 = vmatmul.mubr.f32.gmra.mrb[0].mxu0 %v1005
    %v1128 = vpop.f32.mrb[0].mxu0
    %v1129 = vadd.f32 0.0, %v1128
    %v1130 = vpop.f32.mrb[0].mxu0
    %v1131 = vadd.f32 0.0, %v1130
    %1132 = vdwg.mxu0
    %1133 = vmatprep.subr.mxu0 0.0
    %1134 = vmatpush1.msra.mxu0 %v1016
    %1135 = vmatprep.subr.mxu0 0.0
    %1136 = vmatpush1.msra.mxu0 %v1019
    %1137 = vmatprep.subr.mxu0 0.0
    %1138 = vmatpush1.msra.mxu0 %v1022
    %1139 = vmatprep.subr.mxu0 0.0
    %1140 = vmatpush1.msra.mxu0 %v1025
    %1141 = vmatprep.subr.mxu0 0.0
    %1142 = vmatpush1.msra.mxu0 %v1028
    %1143 = vmatprep.subr.mxu0 0.0
    %1144 = vmatpush1.msra.mxu0 %v1031
    %1145 = vmatprep.subr.mxu0 0.0
    %1146 = vmatpush1.msra.mxu0 %v1034
    %1147 = vmatprep.subr.mxu0 0.0
    %1148 = vmatpush1.msra.mxu0 %v1037
    %1149 = vmatprep.subr.mxu0 0.0
    %1150 = vmatpush1.msra.mxu0 %v1040
    %1151 = vmatprep.subr.mxu0 0.0
    %1152 = vmatpush1.msra.mxu0 %v1043
    %1153 = vmatprep.subr.mxu0 0.0
    %1154 = vmatpush1.msra.mxu0 %v1046
    %1155 = vmatprep.subr.mxu0 0.0
    %1156 = vmatpush1.msra.mxu0 %v1049
    %1157 = vmatprep.subr.mxu0 0.0
    %1158 = vmatpush1.msra.mxu0 %v1052
    %1159 = vmatprep.subr.mxu0 0.0
    %1160 = vmatpush1.msra.mxu0 %v1055
    %1161 = vmatprep.subr.mxu0 0.0
    %1162 = vmatpush1.msra.mxu0 %v1058
    %1163 = vmatprep.subr.mxu0 0.0
    %1164 = vmatpush1.msra.mxu0 %v1061
    %1165 = vmatprep.subr.mxu0 0.0
    %1166 = vmatpush1.msra.mxu0 0.0
    %1167 = vmatprep.subr.mxu0 0.0
    %1168 = vmatpush1.msra.mxu0 0.0
    %1169 = vmatprep.subr.mxu0 0.0
    %1170 = vmatpush1.msra.mxu0 0.0
    %1171 = vmatprep.subr.mxu0 0.0
    %1172 = vmatpush1.msra.mxu0 0.0
    %1173 = vmatprep.subr.mxu0 0.0
    %1174 = vmatpush1.msra.mxu0 0.0
    %1175 = vmatprep.subr.mxu0 0.0
    %1176 = vmatpush1.msra.mxu0 0.0
    %1177 = vmatprep.subr.mxu0 0.0
    %1178 = vmatpush1.msra.mxu0 0.0
    %1179 = vmatprep.subr.mxu0 0.0
    %1180 = vmatpush1.msra.mxu0 0.0
    %1181 = vmatprep.subr.mxu0 0.0
    %1182 = vmatpush1.msra.mxu0 0.0
    %1183 = vmatprep.subr.mxu0 0.0
    %1184 = vmatpush1.msra.mxu0 0.0
    %1185 = vmatprep.subr.mxu0 0.0
    %1186 = vmatpush1.msra.mxu0 0.0
    %1187 = vmatprep.subr.mxu0 0.0
    %1188 = vmatpush1.msra.mxu0 0.0
    %1189 = vmatprep.subr.mxu0 0.0
    %1190 = vmatpush1.msra.mxu0 0.0
    %1191 = vmatprep.subr.mxu0 0.0
    %1192 = vmatpush1.msra.mxu0 0.0
    %1193 = vmatprep.subr.mxu0 0.0
    %1194 = vmatpush1.msra.mxu0 0.0
    %1195 = vmatprep.subr.mxu0 0.0
    %1196 = vmatpush1.msra.mxu0 0.0
    %1197 = vmatprep.mubr.f32.mxu0 0.0
    %1198 = vmatmul.mubr.f32.gmra.mrb[0].mxu0 %v1005
    %v1199 = vpop.f32.mrb[0].mxu0
    %v1200 = vadd.f32 0.0, %v1199
    %v1201 = vpop.f32.mrb[0].mxu0
    %1202 = vdwg.mxu0
    %v1203 = vadd.f32 %v1011, %v1129
    %v1204 = vxor.u32 %v1203, 2147483648
    %v1205 = vmul.f32 %v1204, 1.442695
    %v1206 = vpow.pop %v1205
    %v1207 = vadd.f32 %v1206, 1.0
    %v1208 = vrcp.pop %v1207
    %v1209 = vmul.f32 1.0, %v1208
    %v1210 = vadd.f32 %v1012, %v1131
    %v1211 = vxor.u32 %v1210, 2147483648
    %v1212 = vmul.f32 %v1211, 1.442695
    %v1213 = vpow.pop %v1212
    %v1214 = vadd.f32 %v1213, 1.0
    %v1215 = vrcp.pop %v1214
    %v1216 = vmul.f32 1.0, %v1215
    %v1217 = vadd.f32 %v1200, %v562
    %v1218 = vmul.f32 %v1209, %v1217
    %v1219 = vadd.f32 %v1013, %v1218
    %v1220 = vtanh.pop %v1219
    %v1221 = vsub.f32 %v1005, %v1220
    %v1222 = vmul.f32 %v1216, %v1221
    %v1223 = vadd.f32 %v1220, %v1222
    %s1224 = scalar_lea.vmem [#allocation7], 24
    %1225 = vst [vmem:[%s1224] sm:$0xff] %v1223
    %s1226 = smul.u32 4, 3
    %s1227 = smul.addr %s1226, 8
    %s1228 = scalar_lea.vmem [#allocation2], %s1227
    %v1229 = vld [vmem:[%s1228] sm:$0xff]
    %v1230 = vld [vmem:[%s1228 + $0x8] sm:$0xff]
    %v1231 = vld [vmem:[%s1228 + $0x10] sm:$0xff]
    %v1232 = vld [vmem:[#allocation4] sm:$0xff]
    %v1233 = vld [vmem:[#allocation4 + $0x8] sm:$0xff]
    %v1234 = vld [vmem:[#allocation4 + $0x10] sm:$0xff]
    %v1235 = vld [vmem:[#allocation4 + $0x18] sm:$0xff]
    %v1236 = vld [vmem:[#allocation4 + $0x20] sm:$0xff]
    %v1237 = vld [vmem:[#allocation4 + $0x28] sm:$0xff]
    %v1238 = vld [vmem:[#allocation4 + $0x30] sm:$0xff]
    %v1239 = vld [vmem:[#allocation4 + $0x38] sm:$0xff]
    %v1240 = vld [vmem:[#allocation4 + $0x40] sm:$0xff]
    %v1241 = vld [vmem:[#allocation4 + $0x48] sm:$0xff]
    %v1242 = vld [vmem:[#allocation4 + $0x50] sm:$0xff]
    %v1243 = vld [vmem:[#allocation4 + $0x58] sm:$0xff]
    %v1244 = vld [vmem:[#allocation4 + $0x60] sm:$0xff]
    %v1245 = vld [vmem:[#allocation4 + $0x68] sm:$0xff]
    %v1246 = vld [vmem:[#allocation4 + $0x70] sm:$0xff]
    %v1247 = vld [vmem:[#allocation4 + $0x78] sm:$0xff]
    %v1248 = vld [vmem:[#allocation4 + $0x80] sm:$0xff]
    %v1249 = vld [vmem:[#allocation4 + $0x88] sm:$0xff]
    %v1250 = vld [vmem:[#allocation4 + $0x90] sm:$0xff]
    %v1251 = vld [vmem:[#allocation4 + $0x98] sm:$0xff]
    %v1252 = vld [vmem:[#allocation4 + $0xa0] sm:$0xff]
    %v1253 = vld [vmem:[#allocation4 + $0xa8] sm:$0xff]
    %v1254 = vld [vmem:[#allocation4 + $0xb0] sm:$0xff]
    %v1255 = vld [vmem:[#allocation4 + $0xb8] sm:$0xff]
    %v1256 = vld [vmem:[#allocation4 + $0xc0] sm:$0xff]
    %v1257 = vld [vmem:[#allocation4 + $0xc8] sm:$0xff]
    %v1258 = vld [vmem:[#allocation4 + $0xd0] sm:$0xff]
    %v1259 = vld [vmem:[#allocation4 + $0xd8] sm:$0xff]
    %v1260 = vld [vmem:[#allocation4 + $0xe0] sm:$0xff]
    %v1261 = vld [vmem:[#allocation4 + $0xe8] sm:$0xff]
    %v1262 = vld [vmem:[#allocation4 + $0xf0] sm:$0xff]
    %v1263 = vld [vmem:[#allocation4 + $0xf8] sm:$0xff]
    %v1264 = vld [vmem:[#allocation4 + $0x100] sm:$0xff]
    %v1265 = vld [vmem:[#allocation4 + $0x108] sm:$0xff]
    %v1266 = vld [vmem:[#allocation4 + $0x110] sm:$0xff]
    %v1267 = vld [vmem:[#allocation4 + $0x118] sm:$0xff]
    %v1268 = vld [vmem:[#allocation4 + $0x120] sm:$0xff]
    %v1269 = vld [vmem:[#allocation4 + $0x128] sm:$0xff]
    %v1270 = vld [vmem:[#allocation4 + $0x130] sm:$0xff]
    %v1271 = vld [vmem:[#allocation4 + $0x138] sm:$0xff]
    %v1272 = vld [vmem:[#allocation4 + $0x140] sm:$0xff]
    %v1273 = vld [vmem:[#allocation4 + $0x148] sm:$0xff]
    %v1274 = vld [vmem:[#allocation4 + $0x150] sm:$0xff]
    %v1275 = vld [vmem:[#allocation4 + $0x158] sm:$0xff]
    %v1276 = vld [vmem:[#allocation4 + $0x160] sm:$0xff]
    %v1277 = vld [vmem:[#allocation4 + $0x168] sm:$0xff]
    %v1278 = vld [vmem:[#allocation4 + $0x170] sm:$0xff]
    %v1279 = vld [vmem:[#allocation4 + $0x178] sm:$0xff]
    %1280 = vmatprep.subr.mxu0 %v1233
    %1281 = vmatpush1.msra.mxu0 %v1232
    %1282 = vmatprep.subr.mxu0 %v1236
    %1283 = vmatpush1.msra.mxu0 %v1235
    %1284 = vmatprep.subr.mxu0 %v1239
    %1285 = vmatpush1.msra.mxu0 %v1238
    %1286 = vmatprep.subr.mxu0 %v1242
    %1287 = vmatpush1.msra.mxu0 %v1241
    %1288 = vmatprep.subr.mxu0 %v1245
    %1289 = vmatpush1.msra.mxu0 %v1244
    %1290 = vmatprep.subr.mxu0 %v1248
    %1291 = vmatpush1.msra.mxu0 %v1247
    %1292 = vmatprep.subr.mxu0 %v1251
    %1293 = vmatpush1.msra.mxu0 %v1250
    %1294 = vmatprep.subr.mxu0 %v1254
    %1295 = vmatpush1.msra.mxu0 %v1253
    %1296 = vmatprep.subr.mxu0 %v1257
    %1297 = vmatpush1.msra.mxu0 %v1256
    %1298 = vmatprep.subr.mxu0 %v1260
    %1299 = vmatpush1.msra.mxu0 %v1259
    %1300 = vmatprep.subr.mxu0 %v1263
    %1301 = vmatpush1.msra.mxu0 %v1262
    %1302 = vmatprep.subr.mxu0 %v1266
    %1303 = vmatpush1.msra.mxu0 %v1265
    %1304 = vmatprep.subr.mxu0 %v1269
    %1305 = vmatpush1.msra.mxu0 %v1268
    %1306 = vmatprep.subr.mxu0 %v1272
    %1307 = vmatpush1.msra.mxu0 %v1271
    %1308 = vmatprep.subr.mxu0 %v1275
    %1309 = vmatpush1.msra.mxu0 %v1274
    %1310 = vmatprep.subr.mxu0 %v1278
    %1311 = vmatpush1.msra.mxu0 %v1277
    %1312 = vmatprep.subr.mxu0 0.0
    %1313 = vmatpush1.msra.mxu0 0.0
    %1314 = vmatprep.subr.mxu0 0.0
    %1315 = vmatpush1.msra.mxu0 0.0
    %1316 = vmatprep.subr.mxu0 0.0
    %1317 = vmatpush1.msra.mxu0 0.0
    %1318 = vmatprep.subr.mxu0 0.0
    %1319 = vmatpush1.msra.mxu0 0.0
    %1320 = vmatprep.subr.mxu0 0.0
    %1321 = vmatpush1.msra.mxu0 0.0
    %1322 = vmatprep.subr.mxu0 0.0
    %1323 = vmatpush1.msra.mxu0 0.0
    %1324 = vmatprep.subr.mxu0 0.0
    %1325 = vmatpush1.msra.mxu0 0.0
    %1326 = vmatprep.subr.mxu0 0.0
    %1327 = vmatpush1.msra.mxu0 0.0
    %1328 = vmatprep.subr.mxu0 0.0
    %1329 = vmatpush1.msra.mxu0 0.0
    %1330 = vmatprep.subr.mxu0 0.0
    %1331 = vmatpush1.msra.mxu0 0.0
    %1332 = vmatprep.subr.mxu0 0.0
    %1333 = vmatpush1.msra.mxu0 0.0
    %1334 = vmatprep.subr.mxu0 0.0
    %1335 = vmatpush1.msra.mxu0 0.0
    %1336 = vmatprep.subr.mxu0 0.0
    %1337 = vmatpush1.msra.mxu0 0.0
    %1338 = vmatprep.subr.mxu0 0.0
    %1339 = vmatpush1.msra.mxu0 0.0
    %1340 = vmatprep.subr.mxu0 0.0
    %1341 = vmatpush1.msra.mxu0 0.0
    %1342 = vmatprep.subr.mxu0 0.0
    %1343 = vmatpush1.msra.mxu0 0.0
    %1344 = vmatprep.mubr.f32.mxu0 0.0
    %1345 = vmatmul.mubr.f32.gmra.mrb[0].mxu0 %v1223
    %v1346 = vpop.f32.mrb[0].mxu0
    %v1347 = vadd.f32 0.0, %v1346
    %v1348 = vpop.f32.mrb[0].mxu0
    %v1349 = vadd.f32 0.0, %v1348
    %1350 = vdwg.mxu0
    %1351 = vmatprep.subr.mxu0 0.0
    %1352 = vmatpush1.msra.mxu0 %v1234
    %1353 = vmatprep.subr.mxu0 0.0
    %1354 = vmatpush1.msra.mxu0 %v1237
    %1355 = vmatprep.subr.mxu0 0.0
    %1356 = vmatpush1.msra.mxu0 %v1240
    %1357 = vmatprep.subr.mxu0 0.0
    %1358 = vmatpush1.msra.mxu0 %v1243
    %1359 = vmatprep.subr.mxu0 0.0
    %1360 = vmatpush1.msra.mxu0 %v1246
    %1361 = vmatprep.subr.mxu0 0.0
    %1362 = vmatpush1.msra.mxu0 %v1249
    %1363 = vmatprep.subr.mxu0 0.0
    %1364 = vmatpush1.msra.mxu0 %v1252
    %1365 = vmatprep.subr.mxu0 0.0
    %1366 = vmatpush1.msra.mxu0 %v1255
    %1367 = vmatprep.subr.mxu0 0.0
    %1368 = vmatpush1.msra.mxu0 %v1258
    %1369 = vmatprep.subr.mxu0 0.0
    %1370 = vmatpush1.msra.mxu0 %v1261
    %1371 = vmatprep.subr.mxu0 0.0
    %1372 = vmatpush1.msra.mxu0 %v1264
    %1373 = vmatprep.subr.mxu0 0.0
    %1374 = vmatpush1.msra.mxu0 %v1267
    %1375 = vmatprep.subr.mxu0 0.0
    %1376 = vmatpush1.msra.mxu0 %v1270
    %1377 = vmatprep.subr.mxu0 0.0
    %1378 = vmatpush1.msra.mxu0 %v1273
    %1379 = vmatprep.subr.mxu0 0.0
    %1380 = vmatpush1.msra.mxu0 %v1276
    %1381 = vmatprep.subr.mxu0 0.0
    %1382 = vmatpush1.msra.mxu0 %v1279
    %1383 = vmatprep.subr.mxu0 0.0
    %1384 = vmatpush1.msra.mxu0 0.0
    %1385 = vmatprep.subr.mxu0 0.0
    %1386 = vmatpush1.msra.mxu0 0.0
    %1387 = vmatprep.subr.mxu0 0.0
    %1388 = vmatpush1.msra.mxu0 0.0
    %1389 = vmatprep.subr.mxu0 0.0
    %1390 = vmatpush1.msra.mxu0 0.0
    %1391 = vmatprep.subr.mxu0 0.0
    %1392 = vmatpush1.msra.mxu0 0.0
    %1393 = vmatprep.subr.mxu0 0.0
    %1394 = vmatpush1.msra.mxu0 0.0
    %1395 = vmatprep.subr.mxu0 0.0
    %1396 = vmatpush1.msra.mxu0 0.0
    %1397 = vmatprep.subr.mxu0 0.0
    %1398 = vmatpush1.msra.mxu0 0.0
    %1399 = vmatprep.subr.mxu0 0.0
    %1400 = vmatpush1.msra.mxu0 0.0
    %1401 = vmatprep.subr.mxu0 0.0
    %1402 = vmatpush1.msra.mxu0 0.0
    %1403 = vmatprep.subr.mxu0 0.0
    %1404 = vmatpush1.msra.mxu0 0.0
    %1405 = vmatprep.subr.mxu0 0.0
    %1406 = vmatpush1.msra.mxu0 0.0
    %1407 = vmatprep.subr.mxu0 0.0
    %1408 = vmatpush1.msra.mxu0 0.0
    %1409 = vmatprep.subr.mxu0 0.0
    %1410 = vmatpush1.msra.mxu0 0.0
    %1411 = vmatprep.subr.mxu0 0.0
    %1412 = vmatpush1.msra.mxu0 0.0
    %1413 = vmatprep.subr.mxu0 0.0
    %1414 = vmatpush1.msra.mxu0 0.0
    %1415 = vmatprep.mubr.f32.mxu0 0.0
    %1416 = vmatmul.mubr.f32.gmra.mrb[0].mxu0 %v1223
    %v1417 = vpop.f32.mrb[0].mxu0
    %v1418 = vadd.f32 0.0, %v1417
    %v1419 = vpop.f32.mrb[0].mxu0
    %1420 = vdwg.mxu0
    %v1421 = vadd.f32 %v1229, %v1347
    %v1422 = vxor.u32 %v1421, 2147483648
    %v1423 = vmul.f32 %v1422, 1.442695
    %v1424 = vpow.pop %v1423
    %v1425 = vadd.f32 %v1424, 1.0
    %v1426 = vrcp.pop %v1425
    %v1427 = vmul.f32 1.0, %v1426
    %v1428 = vadd.f32 %v1230, %v1349
    %v1429 = vxor.u32 %v1428, 2147483648
    %v1430 = vmul.f32 %v1429, 1.442695
    %v1431 = vpow.pop %v1430
    %v1432 = vadd.f32 %v1431, 1.0
    %v1433 = vrcp.pop %v1432
    %v1434 = vmul.f32 1.0, %v1433
    %v1435 = vadd.f32 %v1418, %v562
    %v1436 = vmul.f32 %v1427, %v1435
    %v1437 = vadd.f32 %v1231, %v1436
    %v1438 = vtanh.pop %v1437
    %v1439 = vsub.f32 %v1223, %v1438
    %v1440 = vmul.f32 %v1434, %v1439
    %v1441 = vadd.f32 %v1438, %v1440
    %s1442 = scalar_lea.vmem [#allocation7], 32
    %1443 = vst [vmem:[%s1442] sm:$0xff] %v1441
    %s1444 = smul.u32 5, 3
    %s1445 = smul.addr %s1444, 8
    %s1446 = scalar_lea.vmem [#allocation2], %s1445
    %v1447 = vld [vmem:[%s1446] sm:$0xff]
    %v1448 = vld [vmem:[%s1446 + $0x8] sm:$0xff]
    %v1449 = vld [vmem:[%s1446 + $0x10] sm:$0xff]
    %v1450 = vld [vmem:[#allocation4] sm:$0xff]
    %v1451 = vld [vmem:[#allocation4 + $0x8] sm:$0xff]
    %v1452 = vld [vmem:[#allocation4 + $0x10] sm:$0xff]
    %v1453 = vld [vmem:[#allocation4 + $0x18] sm:$0xff]
    %v1454 = vld [vmem:[#allocation4 + $0x20] sm:$0xff]
    %v1455 = vld [vmem:[#allocation4 + $0x28] sm:$0xff]
    %v1456 = vld [vmem:[#allocation4 + $0x30] sm:$0xff]
    %v1457 = vld [vmem:[#allocation4 + $0x38] sm:$0xff]
    %v1458 = vld [vmem:[#allocation4 + $0x40] sm:$0xff]
    %v1459 = vld [vmem:[#allocation4 + $0x48] sm:$0xff]
    %v1460 = vld [vmem:[#allocation4 + $0x50] sm:$0xff]
    %v1461 = vld [vmem:[#allocation4 + $0x58] sm:$0xff]
    %v1462 = vld [vmem:[#allocation4 + $0x60] sm:$0xff]
    %v1463 = vld [vmem:[#allocation4 + $0x68] sm:$0xff]
    %v1464 = vld [vmem:[#allocation4 + $0x70] sm:$0xff]
    %v1465 = vld [vmem:[#allocation4 + $0x78] sm:$0xff]
    %v1466 = vld [vmem:[#allocation4 + $0x80] sm:$0xff]
    %v1467 = vld [vmem:[#allocation4 + $0x88] sm:$0xff]
    %v1468 = vld [vmem:[#allocation4 + $0x90] sm:$0xff]
    %v1469 = vld [vmem:[#allocation4 + $0x98] sm:$0xff]
    %v1470 = vld [vmem:[#allocation4 + $0xa0] sm:$0xff]
    %v1471 = vld [vmem:[#allocation4 + $0xa8] sm:$0xff]
    %v1472 = vld [vmem:[#allocation4 + $0xb0] sm:$0xff]
    %v1473 = vld [vmem:[#allocation4 + $0xb8] sm:$0xff]
    %v1474 = vld [vmem:[#allocation4 + $0xc0] sm:$0xff]
    %v1475 = vld [vmem:[#allocation4 + $0xc8] sm:$0xff]
    %v1476 = vld [vmem:[#allocation4 + $0xd0] sm:$0xff]
    %v1477 = vld [vmem:[#allocation4 + $0xd8] sm:$0xff]
    %v1478 = vld [vmem:[#allocation4 + $0xe0] sm:$0xff]
    %v1479 = vld [vmem:[#allocation4 + $0xe8] sm:$0xff]
    %v1480 = vld [vmem:[#allocation4 + $0xf0] sm:$0xff]
    %v1481 = vld [vmem:[#allocation4 + $0xf8] sm:$0xff]
    %v1482 = vld [vmem:[#allocation4 + $0x100] sm:$0xff]
    %v1483 = vld [vmem:[#allocation4 + $0x108] sm:$0xff]
    %v1484 = vld [vmem:[#allocation4 + $0x110] sm:$0xff]
    %v1485 = vld [vmem:[#allocation4 + $0x118] sm:$0xff]
    %v1486 = vld [vmem:[#allocation4 + $0x120] sm:$0xff]
    %v1487 = vld [vmem:[#allocation4 + $0x128] sm:$0xff]
    %v1488 = vld [vmem:[#allocation4 + $0x130] sm:$0xff]
    %v1489 = vld [vmem:[#allocation4 + $0x138] sm:$0xff]
    %v1490 = vld [vmem:[#allocation4 + $0x140] sm:$0xff]
    %v1491 = vld [vmem:[#allocation4 + $0x148] sm:$0xff]
    %v1492 = vld [vmem:[#allocation4 + $0x150] sm:$0xff]
    %v1493 = vld [vmem:[#allocation4 + $0x158] sm:$0xff]
    %v1494 = vld [vmem:[#allocation4 + $0x160] sm:$0xff]
    %v1495 = vld [vmem:[#allocation4 + $0x168] sm:$0xff]
    %v1496 = vld [vmem:[#allocation4 + $0x170] sm:$0xff]
    %v1497 = vld [vmem:[#allocation4 + $0x178] sm:$0xff]
    %1498 = vmatprep.subr.mxu0 %v1451
    %1499 = vmatpush1.msra.mxu0 %v1450
    %1500 = vmatprep.subr.mxu0 %v1454
    %1501 = vmatpush1.msra.mxu0 %v1453
    %1502 = vmatprep.subr.mxu0 %v1457
    %1503 = vmatpush1.msra.mxu0 %v1456
    %1504 = vmatprep.subr.mxu0 %v1460
    %1505 = vmatpush1.msra.mxu0 %v1459
    %1506 = vmatprep.subr.mxu0 %v1463
    %1507 = vmatpush1.msra.mxu0 %v1462
    %1508 = vmatprep.subr.mxu0 %v1466
    %1509 = vmatpush1.msra.mxu0 %v1465
    %1510 = vmatprep.subr.mxu0 %v1469
    %1511 = vmatpush1.msra.mxu0 %v1468
    %1512 = vmatprep.subr.mxu0 %v1472
    %1513 = vmatpush1.msra.mxu0 %v1471
    %1514 = vmatprep.subr.mxu0 %v1475
    %1515 = vmatpush1.msra.mxu0 %v1474
    %1516 = vmatprep.subr.mxu0 %v1478
    %1517 = vmatpush1.msra.mxu0 %v1477
    %1518 = vmatprep.subr.mxu0 %v1481
    %1519 = vmatpush1.msra.mxu0 %v1480
    %1520 = vmatprep.subr.mxu0 %v1484
    %1521 = vmatpush1.msra.mxu0 %v1483
    %1522 = vmatprep.subr.mxu0 %v1487
    %1523 = vmatpush1.msra.mxu0 %v1486
    %1524 = vmatprep.subr.mxu0 %v1490
    %1525 = vmatpush1.msra.mxu0 %v1489
    %1526 = vmatprep.subr.mxu0 %v1493
    %1527 = vmatpush1.msra.mxu0 %v1492
    %1528 = vmatprep.subr.mxu0 %v1496
    %1529 = vmatpush1.msra.mxu0 %v1495
    %1530 = vmatprep.subr.mxu0 0.0
    %1531 = vmatpush1.msra.mxu0 0.0
    %1532 = vmatprep.subr.mxu0 0.0
    %1533 = vmatpush1.msra.mxu0 0.0
    %1534 = vmatprep.subr.mxu0 0.0
    %1535 = vmatpush1.msra.mxu0 0.0
    %1536 = vmatprep.subr.mxu0 0.0
    %1537 = vmatpush1.msra.mxu0 0.0
    %1538 = vmatprep.subr.mxu0 0.0
    %1539 = vmatpush1.msra.mxu0 0.0
    %1540 = vmatprep.subr.mxu0 0.0
    %1541 = vmatpush1.msra.mxu0 0.0
    %1542 = vmatprep.subr.mxu0 0.0
    %1543 = vmatpush1.msra.mxu0 0.0
    %1544 = vmatprep.subr.mxu0 0.0
    %1545 = vmatpush1.msra.mxu0 0.0
    %1546 = vmatprep.subr.mxu0 0.0
    %1547 = vmatpush1.msra.mxu0 0.0
    %1548 = vmatprep.subr.mxu0 0.0
    %1549 = vmatpush1.msra.mxu0 0.0
    %1550 = vmatprep.subr.mxu0 0.0
    %1551 = vmatpush1.msra.mxu0 0.0
    %1552 = vmatprep.subr.mxu0 0.0
    %1553 = vmatpush1.msra.mxu0 0.0
    %1554 = vmatprep.subr.mxu0 0.0
    %1555 = vmatpush1.msra.mxu0 0.0
    %1556 = vmatprep.subr.mxu0 0.0
    %1557 = vmatpush1.msra.mxu0 0.0
    %1558 = vmatprep.subr.mxu0 0.0
    %1559 = vmatpush1.msra.mxu0 0.0
    %1560 = vmatprep.subr.mxu0 0.0
    %1561 = vmatpush1.msra.mxu0 0.0
    %1562 = vmatprep.mubr.f32.mxu0 0.0
    %1563 = vmatmul.mubr.f32.gmra.mrb[0].mxu0 %v1441
    %v1564 = vpop.f32.mrb[0].mxu0
    %v1565 = vadd.f32 0.0, %v1564
    %v1566 = vpop.f32.mrb[0].mxu0
    %v1567 = vadd.f32 0.0, %v1566
    %1568 = vdwg.mxu0
    %1569 = vmatprep.subr.mxu0 0.0
    %1570 = vmatpush1.msra.mxu0 %v1452
    %1571 = vmatprep.subr.mxu0 0.0
    %1572 = vmatpush1.msra.mxu0 %v1455
    %1573 = vmatprep.subr.mxu0 0.0
    %1574 = vmatpush1.msra.mxu0 %v1458
    %1575 = vmatprep.subr.mxu0 0.0
    %1576 = vmatpush1.msra.mxu0 %v1461
    %1577 = vmatprep.subr.mxu0 0.0
    %1578 = vmatpush1.msra.mxu0 %v1464
    %1579 = vmatprep.subr.mxu0 0.0
    %1580 = vmatpush1.msra.mxu0 %v1467
    %1581 = vmatprep.subr.mxu0 0.0
    %1582 = vmatpush1.msra.mxu0 %v1470
    %1583 = vmatprep.subr.mxu0 0.0
    %1584 = vmatpush1.msra.mxu0 %v1473
    %1585 = vmatprep.subr.mxu0 0.0
    %1586 = vmatpush1.msra.mxu0 %v1476
    %1587 = vmatprep.subr.mxu0 0.0
    %1588 = vmatpush1.msra.mxu0 %v1479
    %1589 = vmatprep.subr.mxu0 0.0
    %1590 = vmatpush1.msra.mxu0 %v1482
    %1591 = vmatprep.subr.mxu0 0.0
    %1592 = vmatpush1.msra.mxu0 %v1485
    %1593 = vmatprep.subr.mxu0 0.0
    %1594 = vmatpush1.msra.mxu0 %v1488
    %1595 = vmatprep.subr.mxu0 0.0
    %1596 = vmatpush1.msra.mxu0 %v1491
    %1597 = vmatprep.subr.mxu0 0.0
    %1598 = vmatpush1.msra.mxu0 %v1494
    %1599 = vmatprep.subr.mxu0 0.0
    %1600 = vmatpush1.msra.mxu0 %v1497
    %1601 = vmatprep.subr.mxu0 0.0
    %1602 = vmatpush1.msra.mxu0 0.0
    %1603 = vmatprep.subr.mxu0 0.0
    %1604 = vmatpush1.msra.mxu0 0.0
    %1605 = vmatprep.subr.mxu0 0.0
    %1606 = vmatpush1.msra.mxu0 0.0
    %1607 = vmatprep.subr.mxu0 0.0
    %1608 = vmatpush1.msra.mxu0 0.0
    %1609 = vmatprep.subr.mxu0 0.0
    %1610 = vmatpush1.msra.mxu0 0.0
    %1611 = vmatprep.subr.mxu0 0.0
    %1612 = vmatpush1.msra.mxu0 0.0
    %1613 = vmatprep.subr.mxu0 0.0
    %1614 = vmatpush1.msra.mxu0 0.0
    %1615 = vmatprep.subr.mxu0 0.0
    %1616 = vmatpush1.msra.mxu0 0.0
    %1617 = vmatprep.subr.mxu0 0.0
    %1618 = vmatpush1.msra.mxu0 0.0
    %1619 = vmatprep.subr.mxu0 0.0
    %1620 = vmatpush1.msra.mxu0 0.0
    %1621 = vmatprep.subr.mxu0 0.0
    %1622 = vmatpush1.msra.mxu0 0.0
    %1623 = vmatprep.subr.mxu0 0.0
    %1624 = vmatpush1.msra.mxu0 0.0
    %1625 = vmatprep.subr.mxu0 0.0
    %1626 = vmatpush1.msra.mxu0 0.0
    %1627 = vmatprep.subr.mxu0 0.0
    %1628 = vmatpush1.msra.mxu0 0.0
    %1629 = vmatprep.subr.mxu0 0.0
    %1630 = vmatpush1.msra.mxu0 0.0
    %1631 = vmatprep.subr.mxu0 0.0
    %1632 = vmatpush1.msra.mxu0 0.0
    %1633 = vmatprep.mubr.f32.mxu0 0.0
    %1634 = vmatmul.mubr.f32.gmra.mrb[0].mxu0 %v1441
    %v1635 = vpop.f32.mrb[0].mxu0
    %v1636 = vadd.f32 0.0, %v1635
    %v1637 = vpop.f32.mrb[0].mxu0
    %1638 = vdwg.mxu0
    %v1639 = vadd.f32 %v1447, %v1565
    %v1640 = vxor.u32 %v1639, 2147483648
    %v1641 = vmul.f32 %v1640, 1.442695
    %v1642 = vpow.pop %v1641
    %v1643 = vadd.f32 %v1642, 1.0
    %v1644 = vrcp.pop %v1643
    %v1645 = vmul.f32 1.0, %v1644
    %v1646 = vadd.f32 %v1448, %v1567
    %v1647 = vxor.u32 %v1646, 2147483648
    %v1648 = vmul.f32 %v1647, 1.442695
    %v1649 = vpow.pop %v1648
    %v1650 = vadd.f32 %v1649, 1.0
    %v1651 = vrcp.pop %v1650
    %v1652 = vmul.f32 1.0, %v1651
    %v1653 = vadd.f32 %v1636, %v562
    %v1654 = vmul.f32 %v1645, %v1653
    %v1655 = vadd.f32 %v1449, %v1654
    %v1656 = vtanh.pop %v1655
    %v1657 = vsub.f32 %v1441, %v1656
    %v1658 = vmul.f32 %v1652, %v1657
    %v1659 = vadd.f32 %v1656, %v1658
    %s1660 = scalar_lea.vmem [#allocation7], 40
    %1661 = vst [vmem:[%s1660] sm:$0xff] %v1659
    %s1662 = smul.u32 6, 3
    %s1663 = smul.addr %s1662, 8
    %s1664 = scalar_lea.vmem [#allocation2], %s1663
    %v1665 = vld [vmem:[%s1664] sm:$0xff]
    %v1666 = vld [vmem:[%s1664 + $0x8] sm:$0xff]
    %v1667 = vld [vmem:[%s1664 + $0x10] sm:$0xff]
    %v1668 = vld [vmem:[#allocation4] sm:$0xff]
    %v1669 = vld [vmem:[#allocation4 + $0x8] sm:$0xff]
    %v1670 = vld [vmem:[#allocation4 + $0x10] sm:$0xff]
    %v1671 = vld [vmem:[#allocation4 + $0x18] sm:$0xff]
    %v1672 = vld [vmem:[#allocation4 + $0x20] sm:$0xff]
    %v1673 = vld [vmem:[#allocation4 + $0x28] sm:$0xff]
    %v1674 = vld [vmem:[#allocation4 + $0x30] sm:$0xff]
    %v1675 = vld [vmem:[#allocation4 + $0x38] sm:$0xff]
    %v1676 = vld [vmem:[#allocation4 + $0x40] sm:$0xff]
    %v1677 = vld [vmem:[#allocation4 + $0x48] sm:$0xff]
    %v1678 = vld [vmem:[#allocation4 + $0x50] sm:$0xff]
    %v1679 = vld [vmem:[#allocation4 + $0x58] sm:$0xff]
    %v1680 = vld [vmem:[#allocation4 + $0x60] sm:$0xff]
    %v1681 = vld [vmem:[#allocation4 + $0x68] sm:$0xff]
    %v1682 = vld [vmem:[#allocation4 + $0x70] sm:$0xff]
    %v1683 = vld [vmem:[#allocation4 + $0x78] sm:$0xff]
    %v1684 = vld [vmem:[#allocation4 + $0x80] sm:$0xff]
    %v1685 = vld [vmem:[#allocation4 + $0x88] sm:$0xff]
    %v1686 = vld [vmem:[#allocation4 + $0x90] sm:$0xff]
    %v1687 = vld [vmem:[#allocation4 + $0x98] sm:$0xff]
    %v1688 = vld [vmem:[#allocation4 + $0xa0] sm:$0xff]
    %v1689 = vld [vmem:[#allocation4 + $0xa8] sm:$0xff]
    %v1690 = vld [vmem:[#allocation4 + $0xb0] sm:$0xff]
    %v1691 = vld [vmem:[#allocation4 + $0xb8] sm:$0xff]
    %v1692 = vld [vmem:[#allocation4 + $0xc0] sm:$0xff]
    %v1693 = vld [vmem:[#allocation4 + $0xc8] sm:$0xff]
    %v1694 = vld [vmem:[#allocation4 + $0xd0] sm:$0xff]
    %v1695 = vld [vmem:[#allocation4 + $0xd8] sm:$0xff]
    %v1696 = vld [vmem:[#allocation4 + $0xe0] sm:$0xff]
    %v1697 = vld [vmem:[#allocation4 + $0xe8] sm:$0xff]
    %v1698 = vld [vmem:[#allocation4 + $0xf0] sm:$0xff]
    %v1699 = vld [vmem:[#allocation4 + $0xf8] sm:$0xff]
    %v1700 = vld [vmem:[#allocation4 + $0x100] sm:$0xff]
    %v1701 = vld [vmem:[#allocation4 + $0x108] sm:$0xff]
    %v1702 = vld [vmem:[#allocation4 + $0x110] sm:$0xff]
    %v1703 = vld [vmem:[#allocation4 + $0x118] sm:$0xff]
    %v1704 = vld [vmem:[#allocation4 + $0x120] sm:$0xff]
    %v1705 = vld [vmem:[#allocation4 + $0x128] sm:$0xff]
    %v1706 = vld [vmem:[#allocation4 + $0x130] sm:$0xff]
    %v1707 = vld [vmem:[#allocation4 + $0x138] sm:$0xff]
    %v1708 = vld [vmem:[#allocation4 + $0x140] sm:$0xff]
    %v1709 = vld [vmem:[#allocation4 + $0x148] sm:$0xff]
    %v1710 = vld [vmem:[#allocation4 + $0x150] sm:$0xff]
    %v1711 = vld [vmem:[#allocation4 + $0x158] sm:$0xff]
    %v1712 = vld [vmem:[#allocation4 + $0x160] sm:$0xff]
    %v1713 = vld [vmem:[#allocation4 + $0x168] sm:$0xff]
    %v1714 = vld [vmem:[#allocation4 + $0x170] sm:$0xff]
    %v1715 = vld [vmem:[#allocation4 + $0x178] sm:$0xff]
    %1716 = vmatprep.subr.mxu0 %v1669
    %1717 = vmatpush1.msra.mxu0 %v1668
    %1718 = vmatprep.subr.mxu0 %v1672
    %1719 = vmatpush1.msra.mxu0 %v1671
    %1720 = vmatprep.subr.mxu0 %v1675
    %1721 = vmatpush1.msra.mxu0 %v1674
    %1722 = vmatprep.subr.mxu0 %v1678
    %1723 = vmatpush1.msra.mxu0 %v1677
    %1724 = vmatprep.subr.mxu0 %v1681
    %1725 = vmatpush1.msra.mxu0 %v1680
    %1726 = vmatprep.subr.mxu0 %v1684
    %1727 = vmatpush1.msra.mxu0 %v1683
    %1728 = vmatprep.subr.mxu0 %v1687
    %1729 = vmatpush1.msra.mxu0 %v1686
    %1730 = vmatprep.subr.mxu0 %v1690
    %1731 = vmatpush1.msra.mxu0 %v1689
    %1732 = vmatprep.subr.mxu0 %v1693
    %1733 = vmatpush1.msra.mxu0 %v1692
    %1734 = vmatprep.subr.mxu0 %v1696
    %1735 = vmatpush1.msra.mxu0 %v1695
    %1736 = vmatprep.subr.mxu0 %v1699
    %1737 = vmatpush1.msra.mxu0 %v1698
    %1738 = vmatprep.subr.mxu0 %v1702
    %1739 = vmatpush1.msra.mxu0 %v1701
    %1740 = vmatprep.subr.mxu0 %v1705
    %1741 = vmatpush1.msra.mxu0 %v1704
    %1742 = vmatprep.subr.mxu0 %v1708
    %1743 = vmatpush1.msra.mxu0 %v1707
    %1744 = vmatprep.subr.mxu0 %v1711
    %1745 = vmatpush1.msra.mxu0 %v1710
    %1746 = vmatprep.subr.mxu0 %v1714
    %1747 = vmatpush1.msra.mxu0 %v1713
    %1748 = vmatprep.subr.mxu0 0.0
    %1749 = vmatpush1.msra.mxu0 0.0
    %1750 = vmatprep.subr.mxu0 0.0
    %1751 = vmatpush1.msra.mxu0 0.0
    %1752 = vmatprep.subr.mxu0 0.0
    %1753 = vmatpush1.msra.mxu0 0.0
    %1754 = vmatprep.subr.mxu0 0.0
    %1755 = vmatpush1.msra.mxu0 0.0
    %1756 = vmatprep.subr.mxu0 0.0
    %1757 = vmatpush1.msra.mxu0 0.0
    %1758 = vmatprep.subr.mxu0 0.0
    %1759 = vmatpush1.msra.mxu0 0.0
    %1760 = vmatprep.subr.mxu0 0.0
    %1761 = vmatpush1.msra.mxu0 0.0
    %1762 = vmatprep.subr.mxu0 0.0
    %1763 = vmatpush1.msra.mxu0 0.0
    %1764 = vmatprep.subr.mxu0 0.0
    %1765 = vmatpush1.msra.mxu0 0.0
    %1766 = vmatprep.subr.mxu0 0.0
    %1767 = vmatpush1.msra.mxu0 0.0
    %1768 = vmatprep.subr.mxu0 0.0
    %1769 = vmatpush1.msra.mxu0 0.0
    %1770 = vmatprep.subr.mxu0 0.0
    %1771 = vmatpush1.msra.mxu0 0.0
    %1772 = vmatprep.subr.mxu0 0.0
    %1773 = vmatpush1.msra.mxu0 0.0
    %1774 = vmatprep.subr.mxu0 0.0
    %1775 = vmatpush1.msra.mxu0 0.0
    %1776 = vmatprep.subr.mxu0 0.0
    %1777 = vmatpush1.msra.mxu0 0.0
    %1778 = vmatprep.subr.mxu0 0.0
    %1779 = vmatpush1.msra.mxu0 0.0
    %1780 = vmatprep.mubr.f32.mxu0 0.0
    %1781 = vmatmul.mubr.f32.gmra.mrb[0].mxu0 %v1659
    %v1782 = vpop.f32.mrb[0].mxu0
    %v1783 = vadd.f32 0.0, %v1782
    %v1784 = vpop.f32.mrb[0].mxu0
    %v1785 = vadd.f32 0.0, %v1784
    %1786 = vdwg.mxu0
    %1787 = vmatprep.subr.mxu0 0.0
    %1788 = vmatpush1.msra.mxu0 %v1670
    %1789 = vmatprep.subr.mxu0 0.0
    %1790 = vmatpush1.msra.mxu0 %v1673
    %1791 = vmatprep.subr.mxu0 0.0
    %1792 = vmatpush1.msra.mxu0 %v1676
    %1793 = vmatprep.subr.mxu0 0.0
    %1794 = vmatpush1.msra.mxu0 %v1679
    %1795 = vmatprep.subr.mxu0 0.0
    %1796 = vmatpush1.msra.mxu0 %v1682
    %1797 = vmatprep.subr.mxu0 0.0
    %1798 = vmatpush1.msra.mxu0 %v1685
    %1799 = vmatprep.subr.mxu0 0.0
    %1800 = vmatpush1.msra.mxu0 %v1688
    %1801 = vmatprep.subr.mxu0 0.0
    %1802 = vmatpush1.msra.mxu0 %v1691
    %1803 = vmatprep.subr.mxu0 0.0
    %1804 = vmatpush1.msra.mxu0 %v1694
    %1805 = vmatprep.subr.mxu0 0.0
    %1806 = vmatpush1.msra.mxu0 %v1697
    %1807 = vmatprep.subr.mxu0 0.0
    %1808 = vmatpush1.msra.mxu0 %v1700
    %1809 = vmatprep.subr.mxu0 0.0
    %1810 = vmatpush1.msra.mxu0 %v1703
    %1811 = vmatprep.subr.mxu0 0.0
    %1812 = vmatpush1.msra.mxu0 %v1706
    %1813 = vmatprep.subr.mxu0 0.0
    %1814 = vmatpush1.msra.mxu0 %v1709
    %1815 = vmatprep.subr.mxu0 0.0
    %1816 = vmatpush1.msra.mxu0 %v1712
    %1817 = vmatprep.subr.mxu0 0.0
    %1818 = vmatpush1.msra.mxu0 %v1715
    %1819 = vmatprep.subr.mxu0 0.0
    %1820 = vmatpush1.msra.mxu0 0.0
    %1821 = vmatprep.subr.mxu0 0.0
    %1822 = vmatpush1.msra.mxu0 0.0
    %1823 = vmatprep.subr.mxu0 0.0
    %1824 = vmatpush1.msra.mxu0 0.0
    %1825 = vmatprep.subr.mxu0 0.0
    %1826 = vmatpush1.msra.mxu0 0.0
    %1827 = vmatprep.subr.mxu0 0.0
    %1828 = vmatpush1.msra.mxu0 0.0
    %1829 = vmatprep.subr.mxu0 0.0
    %1830 = vmatpush1.msra.mxu0 0.0
    %1831 = vmatprep.subr.mxu0 0.0
    %1832 = vmatpush1.msra.mxu0 0.0
    %1833 = vmatprep.subr.mxu0 0.0
    %1834 = vmatpush1.msra.mxu0 0.0
    %1835 = vmatprep.subr.mxu0 0.0
    %1836 = vmatpush1.msra.mxu0 0.0
    %1837 = vmatprep.subr.mxu0 0.0
    %1838 = vmatpush1.msra.mxu0 0.0
    %1839 = vmatprep.subr.mxu0 0.0
    %1840 = vmatpush1.msra.mxu0 0.0
    %1841 = vmatprep.subr.mxu0 0.0
    %1842 = vmatpush1.msra.mxu0 0.0
    %1843 = vmatprep.subr.mxu0 0.0
    %1844 = vmatpush1.msra.mxu0 0.0
    %1845 = vmatprep.subr.mxu0 0.0
    %1846 = vmatpush1.msra.mxu0 0.0
    %1847 = vmatprep.subr.mxu0 0.0
    %1848 = vmatpush1.msra.mxu0 0.0
    %1849 = vmatprep.subr.mxu0 0.0
    %1850 = vmatpush1.msra.mxu0 0.0
    %1851 = vmatprep.mubr.f32.mxu0 0.0
    %1852 = vmatmul.mubr.f32.gmra.mrb[0].mxu0 %v1659
    %v1853 = vpop.f32.mrb[0].mxu0
    %v1854 = vadd.f32 0.0, %v1853
    %v1855 = vpop.f32.mrb[0].mxu0
    %1856 = vdwg.mxu0
    %v1857 = vadd.f32 %v1665, %v1783
    %v1858 = vxor.u32 %v1857, 2147483648
    %v1859 = vmul.f32 %v1858, 1.442695
    %v1860 = vpow.pop %v1859
    %v1861 = vadd.f32 %v1860, 1.0
    %v1862 = vrcp.pop %v1861
    %v1863 = vmul.f32 1.0, %v1862
    %v1864 = vadd.f32 %v1666, %v1785
    %v1865 = vxor.u32 %v1864, 2147483648
    %v1866 = vmul.f32 %v1865, 1.442695
    %v1867 = vpow.pop %v1866
    %v1868 = vadd.f32 %v1867, 1.0
    %v1869 = vrcp.pop %v1868
    %v1870 = vmul.f32 1.0, %v1869
    %v1871 = vadd.f32 %v1854, %v562
    %v1872 = vmul.f32 %v1863, %v1871
    %v1873 = vadd.f32 %v1667, %v1872
    %v1874 = vtanh.pop %v1873
    %v1875 = vsub.f32 %v1659, %v1874
    %v1876 = vmul.f32 %v1870, %v1875
    %v1877 = vadd.f32 %v1874, %v1876
    %s1878 = scalar_lea.vmem [#allocation7], 48
    %1879 = vst [vmem:[%s1878] sm:$0xff] %v1877
    %s1880 = smul.u32 7, 3
    %s1881 = smul.addr %s1880, 8
    %s1882 = scalar_lea.vmem [#allocation2], %s1881
    %v1883 = vld [vmem:[%s1882] sm:$0xff]
    %v1884 = vld [vmem:[%s1882 + $0x8] sm:$0xff]
    %v1885 = vld [vmem:[%s1882 + $0x10] sm:$0xff]
    %v1886 = vld [vmem:[#allocation4] sm:$0xff]
    %v1887 = vld [vmem:[#allocation4 + $0x8] sm:$0xff]
    %v1888 = vld [vmem:[#allocation4 + $0x10] sm:$0xff]
    %v1889 = vld [vmem:[#allocation4 + $0x18] sm:$0xff]
    %v1890 = vld [vmem:[#allocation4 + $0x20] sm:$0xff]
    %v1891 = vld [vmem:[#allocation4 + $0x28] sm:$0xff]
    %v1892 = vld [vmem:[#allocation4 + $0x30] sm:$0xff]
    %v1893 = vld [vmem:[#allocation4 + $0x38] sm:$0xff]
    %v1894 = vld [vmem:[#allocation4 + $0x40] sm:$0xff]
    %v1895 = vld [vmem:[#allocation4 + $0x48] sm:$0xff]
    %v1896 = vld [vmem:[#allocation4 + $0x50] sm:$0xff]
    %v1897 = vld [vmem:[#allocation4 + $0x58] sm:$0xff]
    %v1898 = vld [vmem:[#allocation4 + $0x60] sm:$0xff]
    %v1899 = vld [vmem:[#allocation4 + $0x68] sm:$0xff]
    %v1900 = vld [vmem:[#allocation4 + $0x70] sm:$0xff]
    %v1901 = vld [vmem:[#allocation4 + $0x78] sm:$0xff]
    %v1902 = vld [vmem:[#allocation4 + $0x80] sm:$0xff]
    %v1903 = vld [vmem:[#allocation4 + $0x88] sm:$0xff]
    %v1904 = vld [vmem:[#allocation4 + $0x90] sm:$0xff]
    %v1905 = vld [vmem:[#allocation4 + $0x98] sm:$0xff]
    %v1906 = vld [vmem:[#allocation4 + $0xa0] sm:$0xff]
    %v1907 = vld [vmem:[#allocation4 + $0xa8] sm:$0xff]
    %v1908 = vld [vmem:[#allocation4 + $0xb0] sm:$0xff]
    %v1909 = vld [vmem:[#allocation4 + $0xb8] sm:$0xff]
    %v1910 = vld [vmem:[#allocation4 + $0xc0] sm:$0xff]
    %v1911 = vld [vmem:[#allocation4 + $0xc8] sm:$0xff]
    %v1912 = vld [vmem:[#allocation4 + $0xd0] sm:$0xff]
    %v1913 = vld [vmem:[#allocation4 + $0xd8] sm:$0xff]
    %v1914 = vld [vmem:[#allocation4 + $0xe0] sm:$0xff]
    %v1915 = vld [vmem:[#allocation4 + $0xe8] sm:$0xff]
    %v1916 = vld [vmem:[#allocation4 + $0xf0] sm:$0xff]
    %v1917 = vld [vmem:[#allocation4 + $0xf8] sm:$0xff]
    %v1918 = vld [vmem:[#allocation4 + $0x100] sm:$0xff]
    %v1919 = vld [vmem:[#allocation4 + $0x108] sm:$0xff]
    %v1920 = vld [vmem:[#allocation4 + $0x110] sm:$0xff]
    %v1921 = vld [vmem:[#allocation4 + $0x118] sm:$0xff]
    %v1922 = vld [vmem:[#allocation4 + $0x120] sm:$0xff]
    %v1923 = vld [vmem:[#allocation4 + $0x128] sm:$0xff]
    %v1924 = vld [vmem:[#allocation4 + $0x130] sm:$0xff]
    %v1925 = vld [vmem:[#allocation4 + $0x138] sm:$0xff]
    %v1926 = vld [vmem:[#allocation4 + $0x140] sm:$0xff]
    %v1927 = vld [vmem:[#allocation4 + $0x148] sm:$0xff]
    %v1928 = vld [vmem:[#allocation4 + $0x150] sm:$0xff]
    %v1929 = vld [vmem:[#allocation4 + $0x158] sm:$0xff]
    %v1930 = vld [vmem:[#allocation4 + $0x160] sm:$0xff]
    %v1931 = vld [vmem:[#allocation4 + $0x168] sm:$0xff]
    %v1932 = vld [vmem:[#allocation4 + $0x170] sm:$0xff]
    %v1933 = vld [vmem:[#allocation4 + $0x178] sm:$0xff]
    %1934 = vmatprep.subr.mxu0 %v1887
    %1935 = vmatpush1.msra.mxu0 %v1886
    %1936 = vmatprep.subr.mxu0 %v1890
    %1937 = vmatpush1.msra.mxu0 %v1889
    %1938 = vmatprep.subr.mxu0 %v1893
    %1939 = vmatpush1.msra.mxu0 %v1892
    %1940 = vmatprep.subr.mxu0 %v1896
    %1941 = vmatpush1.msra.mxu0 %v1895
    %1942 = vmatprep.subr.mxu0 %v1899
    %1943 = vmatpush1.msra.mxu0 %v1898
    %1944 = vmatprep.subr.mxu0 %v1902
    %1945 = vmatpush1.msra.mxu0 %v1901
    %1946 = vmatprep.subr.mxu0 %v1905
    %1947 = vmatpush1.msra.mxu0 %v1904
    %1948 = vmatprep.subr.mxu0 %v1908
    %1949 = vmatpush1.msra.mxu0 %v1907
    %1950 = vmatprep.subr.mxu0 %v1911
    %1951 = vmatpush1.msra.mxu0 %v1910
    %1952 = vmatprep.subr.mxu0 %v1914
    %1953 = vmatpush1.msra.mxu0 %v1913
    %1954 = vmatprep.subr.mxu0 %v1917
    %1955 = vmatpush1.msra.mxu0 %v1916
    %1956 = vmatprep.subr.mxu0 %v1920
    %1957 = vmatpush1.msra.mxu0 %v1919
    %1958 = vmatprep.subr.mxu0 %v1923
    %1959 = vmatpush1.msra.mxu0 %v1922
    %1960 = vmatprep.subr.mxu0 %v1926
    %1961 = vmatpush1.msra.mxu0 %v1925
    %1962 = vmatprep.subr.mxu0 %v1929
    %1963 = vmatpush1.msra.mxu0 %v1928
    %1964 = vmatprep.subr.mxu0 %v1932
    %1965 = vmatpush1.msra.mxu0 %v1931
    %1966 = vmatprep.subr.mxu0 0.0
    %1967 = vmatpush1.msra.mxu0 0.0
    %1968 = vmatprep.subr.mxu0 0.0
    %1969 = vmatpush1.msra.mxu0 0.0
    %1970 = vmatprep.subr.mxu0 0.0
    %1971 = vmatpush1.msra.mxu0 0.0
    %1972 = vmatprep.subr.mxu0 0.0
    %1973 = vmatpush1.msra.mxu0 0.0
    %1974 = vmatprep.subr.mxu0 0.0
    %1975 = vmatpush1.msra.mxu0 0.0
    %1976 = vmatprep.subr.mxu0 0.0
    %1977 = vmatpush1.msra.mxu0 0.0
    %1978 = vmatprep.subr.mxu0 0.0
    %1979 = vmatpush1.msra.mxu0 0.0
    %1980 = vmatprep.subr.mxu0 0.0
    %1981 = vmatpush1.msra.mxu0 0.0
    %1982 = vmatprep.subr.mxu0 0.0
    %1983 = vmatpush1.msra.mxu0 0.0
    %1984 = vmatprep.subr.mxu0 0.0
    %1985 = vmatpush1.msra.mxu0 0.0
    %1986 = vmatprep.subr.mxu0 0.0
    %1987 = vmatpush1.msra.mxu0 0.0
    %1988 = vmatprep.subr.mxu0 0.0
    %1989 = vmatpush1.msra.mxu0 0.0
    %1990 = vmatprep.subr.mxu0 0.0
    %1991 = vmatpush1.msra.mxu0 0.0
    %1992 = vmatprep.subr.mxu0 0.0
    %1993 = vmatpush1.msra.mxu0 0.0
    %1994 = vmatprep.subr.mxu0 0.0
    %1995 = vmatpush1.msra.mxu0 0.0
    %1996 = vmatprep.subr.mxu0 0.0
    %1997 = vmatpush1.msra.mxu0 0.0
    %1998 = vmatprep.mubr.f32.mxu0 0.0
    %1999 = vmatmul.mubr.f32.gmra.mrb[0].mxu0 %v1877
    %v2000 = vpop.f32.mrb[0].mxu0
    %v2001 = vadd.f32 0.0, %v2000
    %v2002 = vpop.f32.mrb[0].mxu0
    %v2003 = vadd.f32 0.0, %v2002
    %2004 = vdwg.mxu0
    %2005 = vmatprep.subr.mxu0 0.0
    %2006 = vmatpush1.msra.mxu0 %v1888
    %2007 = vmatprep.subr.mxu0 0.0
    %2008 = vmatpush1.msra.mxu0 %v1891
    %2009 = vmatprep.subr.mxu0 0.0
    %2010 = vmatpush1.msra.mxu0 %v1894
    %2011 = vmatprep.subr.mxu0 0.0
    %2012 = vmatpush1.msra.mxu0 %v1897
    %2013 = vmatprep.subr.mxu0 0.0
    %2014 = vmatpush1.msra.mxu0 %v1900
    %2015 = vmatprep.subr.mxu0 0.0
    %2016 = vmatpush1.msra.mxu0 %v1903
    %2017 = vmatprep.subr.mxu0 0.0
    %2018 = vmatpush1.msra.mxu0 %v1906
    %2019 = vmatprep.subr.mxu0 0.0
    %2020 = vmatpush1.msra.mxu0 %v1909
    %2021 = vmatprep.subr.mxu0 0.0
    %2022 = vmatpush1.msra.mxu0 %v1912
    %2023 = vmatprep.subr.mxu0 0.0
    %2024 = vmatpush1.msra.mxu0 %v1915
    %2025 = vmatprep.subr.mxu0 0.0
    %2026 = vmatpush1.msra.mxu0 %v1918
    %2027 = vmatprep.subr.mxu0 0.0
    %2028 = vmatpush1.msra.mxu0 %v1921
    %2029 = vmatprep.subr.mxu0 0.0
    %2030 = vmatpush1.msra.mxu0 %v1924
    %2031 = vmatprep.subr.mxu0 0.0
    %2032 = vmatpush1.msra.mxu0 %v1927
    %2033 = vmatprep.subr.mxu0 0.0
    %2034 = vmatpush1.msra.mxu0 %v1930
    %2035 = vmatprep.subr.mxu0 0.0
    %2036 = vmatpush1.msra.mxu0 %v1933
    %2037 = vmatprep.subr.mxu0 0.0
    %2038 = vmatpush1.msra.mxu0 0.0
    %2039 = vmatprep.subr.mxu0 0.0
    %2040 = vmatpush1.msra.mxu0 0.0
    %2041 = vmatprep.subr.mxu0 0.0
    %2042 = vmatpush1.msra.mxu0 0.0
    %2043 = vmatprep.subr.mxu0 0.0
    %2044 = vmatpush1.msra.mxu0 0.0
    %2045 = vmatprep.subr.mxu0 0.0
    %2046 = vmatpush1.msra.mxu0 0.0
    %2047 = vmatprep.subr.mxu0 0.0
    %2048 = vmatpush1.msra.mxu0 0.0
    %2049 = vmatprep.subr.mxu0 0.0
    %2050 = vmatpush1.msra.mxu0 0.0
    %2051 = vmatprep.subr.mxu0 0.0
    %2052 = vmatpush1.msra.mxu0 0.0
    %2053 = vmatprep.subr.mxu0 0.0
    %2054 = vmatpush1.msra.mxu0 0.0
    %2055 = vmatprep.subr.mxu0 0.0
    %2056 = vmatpush1.msra.mxu0 0.0
    %2057 = vmatprep.subr.mxu0 0.0
    %2058 = vmatpush1.msra.mxu0 0.0
    %2059 = vmatprep.subr.mxu0 0.0
    %2060 = vmatpush1.msra.mxu0 0.0
    %2061 = vmatprep.subr.mxu0 0.0
    %2062 = vmatpush1.msra.mxu0 0.0
    %2063 = vmatprep.subr.mxu0 0.0
    %2064 = vmatpush1.msra.mxu0 0.0
    %2065 = vmatprep.subr.mxu0 0.0
    %2066 = vmatpush1.msra.mxu0 0.0
    %2067 = vmatprep.subr.mxu0 0.0
    %2068 = vmatpush1.msra.mxu0 0.0
    %2069 = vmatprep.mubr.f32.mxu0 0.0
    %2070 = vmatmul.mubr.f32.gmra.mrb[0].mxu0 %v1877
    %v2071 = vpop.f32.mrb[0].mxu0
    %v2072 = vadd.f32 0.0, %v2071
    %v2073 = vpop.f32.mrb[0].mxu0
    %2074 = vdwg.mxu0
    %v2075 = vadd.f32 %v1883, %v2001
    %v2076 = vxor.u32 %v2075, 2147483648
    %v2077 = vmul.f32 %v2076, 1.442695
    %v2078 = vpow.pop %v2077
    %v2079 = vadd.f32 %v2078, 1.0
    %v2080 = vrcp.pop %v2079
    %v2081 = vmul.f32 1.0, %v2080
    %v2082 = vadd.f32 %v1884, %v2003
    %v2083 = vxor.u32 %v2082, 2147483648
    %v2084 = vmul.f32 %v2083, 1.442695
    %v2085 = vpow.pop %v2084
    %v2086 = vadd.f32 %v2085, 1.0
    %v2087 = vrcp.pop %v2086
    %v2088 = vmul.f32 1.0, %v2087
    %v2089 = vadd.f32 %v2072, %v562
    %v2090 = vmul.f32 %v2081, %v2089
    %v2091 = vadd.f32 %v1885, %v2090
    %v2092 = vtanh.pop %v2091
    %v2093 = vsub.f32 %v1877, %v2092
    %v2094 = vmul.f32 %v2088, %v2093
    %v2095 = vadd.f32 %v2092, %v2094
    %s2096 = scalar_lea.vmem [#allocation7], 56
    %2097 = vst [vmem:[%s2096] sm:$0xff] %v2095
    %2098 = vst [vmem:[#allocation3] sm:$0xff] %v2095
    // Predicated region
    $region30: #{tpu_custom_call.1} parent=1 // pred_check
      %p2099 = pneg %p38
    $region31: #{tpu_custom_call.1} parent=1 // pred_check_branch
      %2101 = sbr.rel (%p2099) target = $region33
    $region32: #{tpu_custom_call.1} parent=1 // pred_region
      %v2102 = vld [vmem:[#allocation3] sm:$0xff]
      %2103 = vst [vmem:[#allocation8] sm:$0xff] %v2102
    $region33: #{tpu_custom_call.1} parent=1 // pred_fallthru
      _
    // Predicated region
    $region34: #{tpu_custom_call.1} parent=1 // pred_check
      _
    $region35: #{tpu_custom_call.1} parent=1 // pred_check_branch
      %2105 = sbr.rel (0) target = $region37
    $region36: #{tpu_custom_call.1} parent=1 // pred_region
      %s2107 = ssub.s32 1024, 1024
      %2108 = vsyncadd [#allocation6], %s2107
      %s2109 = sshll.u32 [#allocation7], 4
      %s2110 = int_to_ptr.vmem [resolvable:$true] %s2109
      %2115 = dma.vmem_to_hbm [thread:$0]  %s2110, 1024, %s5, [#allocation6], 128, 128, 8
    $region37: #{tpu_custom_call.1} parent=1 // pred_fallthru
      _
    // Predicated region
    $region38: #{tpu_custom_call.1} parent=1 // pred_check
      _
    $region39: #{tpu_custom_call.1} parent=1 // pred_check_branch
      %2117 = sbr.rel (0) target = $region41
    $region40: #{tpu_custom_call.1} parent=1 // pred_region
      %s2119 = ssub.s32 128, 128
      %2120 = vsyncadd [#allocation9], %s2119
      %s2122 = sshll.u32 [#allocation8], 4
      %s2123 = int_to_ptr.vmem [resolvable:$true] %s2122
      %2125 = dma.vmem_to_hbm [thread:$0]  %s2123, 128, %s6, [#allocation9]
    $region41: #{tpu_custom_call.1} parent=1 // pred_fallthru
      _
    // Predicated region
    $region42: #{tpu_custom_call.1} parent=1 // pred_check
      _
    $region43: #{tpu_custom_call.1} parent=1 // pred_check_branch
      %2127 = sbr.rel (0) target = $region45
    $region44: #{tpu_custom_call.1} parent=1 // pred_region
      %2128 = dma.done [#allocation6], 1024
    $region45: #{tpu_custom_call.1} parent=1 // pred_fallthru
      _
    // Predicated region
    $region46: #{tpu_custom_call.1} parent=1 // pred_check
      _
    $region47: #{tpu_custom_call.1} parent=1 // pred_check_branch
      %2130 = sbr.rel (0) target = $region49
    $region48: #{tpu_custom_call.1} parent=1 // pred_region
      %2131 = dma.done [#allocation9], 128
    $region49: #{tpu_custom_call.1} parent=1 // pred_fallthru
      _
    %2132 = vsyncpa [#allocation5], 1
    %2133 = vsyncpa [#allocation6], 1
    %2134 = vsyncpa [#allocation9], 1

</llo_original>
